<compile_context>
chip_gen: v7x
topology: tpu7x:2x2x1
jax: 0.10.0
libtpu: 0.0.40
codegen_flags: <defaults>
</compile_context>

<pallas_src>
import functools
import math

import jax
import jax.numpy as jnp
from jax.experimental import pallas as pl
from jax.experimental.pallas import tpu as pltpu


def _attn_kernel(t_actual, hid_ref, enc_ref, w1t_ref, w2t_ref, bias_ref, v_ref,
                 out_ref, hb_ref, sc_ref):
    """Grid = (batch blocks [parallel], T blocks [arbitrary/reduction])."""
    j = pl.program_id(1)
    BT, BB, H = enc_ref.shape            # (block_t, block_b, H), all static
    T_pad = sc_ref.shape[0]              # padded sequence length (static)

    # Hidden projection + bias: computed once per batch block (first T step) and
    # kept in a small f32 scratch (P3 accumulator-style init via pl.when).
    @pl.when(j == 0)
    def _():
        hb_ref[...] = (
            jnp.dot(hid_ref[...].astype(jnp.bfloat16), w1t_ref[...],
                    preferred_element_type=jnp.float32)
            + bias_ref[...])                                           # (BB, H) f32

    # One MXU matmul for this (block_t, block_b) encoder tile, in NATIVE (T,B,H)
    # layout: bf16 cast happens here (no extra HBM pass in the wrapper).
    enc = enc_ref[...].astype(jnp.bfloat16).reshape(BT * BB, H)
    e_proj = jnp.dot(enc, w2t_ref[...],
                     preferred_element_type=jnp.float32)               # (BT*BB, H) f32

    # tanh in f32 on the EUP; contract H on the VPU (no transpose, no M=1 matmul).
    energy = jnp.tanh(e_proj.reshape(BT, BB, H) + hb_ref[...][None, :, :])
    sc_tb = jnp.sum(energy * v_ref[...].reshape(1, 1, H), axis=-1)     # (BT, BB) f32

    # Store this T-chunk of scores into the per-batch-block scratch (sublane offset).
    sc_ref[pl.ds(pl.multiple_of(j * BT, BT), BT), :] = sc_tb

    # Final T step: one tiny XLU transpose -> lane-dense (BB, T_pad), masked softmax.
    @pl.when(j == pl.num_programs(1) - 1)
    def _():
        scores = sc_ref[...].T                                         # (BB, T_pad)
        if T_pad != t_actual:   # static; only when T was padded to a block multiple
            col = jax.lax.broadcasted_iota(jnp.int32, scores.shape, 1)
            scores = jnp.where(col < t_actual, scores, -1e30)
        m = jnp.max(scores, axis=-1, keepdims=True)
        ex = jnp.exp(scores - m)
        # Exact divide: rows sum to 1 to f32 precision (cheap on a (BB, T) slab).
        out_ref[...] = (ex / jnp.sum(ex, axis=-1, keepdims=True)).astype(out_ref.dtype)


def attn_forward(hidden, encoder_outputs, weight, bias, v, *,
                 block_b=None, block_t=None):
    """hidden: (1, B, H); encoder_outputs: (T, B, H); weight: (H, 2H); bias: (H,); v: (H,).

    Returns (B, 1, T) softmax attention weights (matches the PyTorch forward).
    """
    T, B, H = encoder_outputs.shape

    # ---- small-operand prep (cheap, O(H^2)): split Linear weight, pre-cast to bf16 ----
    hid2 = hidden[0].astype(jnp.float32)                 # (B, H); bf16 cast in-kernel
    w1t = weight[:, :H].T.astype(jnp.bfloat16)           # (H, H) acts on hidden
    w2t = weight[:, H:].T.astype(jnp.bfloat16)           # (H, H) acts on encoder outputs
    bias2 = bias[None, :].astype(jnp.float32)            # (1, H)
    v2 = v[None, :].astype(jnp.float32)                  # (1, H)

    # ---- VMEM-budgeted block sizes (per chip generation) ----
    try:
        vmem_cap = int(pltpu.get_tpu_info().vmem_capacity_bytes)
    except Exception:
        vmem_cap = 64 * 1024 * 1024                      # conservative (v7x-sized) default
    budget = int(vmem_cap * 0.55)                        # ~35 MiB on v7x, ~70 MiB v5e/v6e

    b_ceil8 = -(-B // 8) * 8
    if block_b is None:
        block_b = min(b_ceil8, 256)
        # Keep >=2 batch grid steps when B allows so the "parallel" axis can be
        # sharded across TensorCores (megacore / v7x 2-TC chips).
        if b_ceil8 >= 16 and b_ceil8 // block_b < 2:
            block_b = max(8, ((b_ceil8 // 2) // 8) * 8)
    block_b = max(8, (min(block_b, b_ceil8) // 8) * 8)

    # Per-step VMEM estimate: double-buffered f32 enc rows + f32 tanh/energy
    # intermediates (~16*H bytes/row) + single-buffered bf16 weights + hid block.
    fixed = 2 * H * H * 2 + 4 * H * 4 + 2 * block_b * H * 4
    per_row = 2 * H * 4 + 8 * H
    rows = max(block_b, min(4096, (budget - fixed) // max(per_row, 1)))
    if block_t is None:
        block_t = max(1, min(T, rows // block_b))
        # Prefer a divisor of T: avoids an extra HBM padding pass over the encoder.
        for cand in range(block_t, max(1, block_t // 2) - 1, -1):
            if T % cand == 0:
                block_t = cand
                break
    block_t = max(1, min(block_t, T))

    B_pad = -(-B // block_b) * block_b
    T_pad = -(-T // block_t) * block_t

    # ---- pad only when needed (zero-width pads are no-ops) ----
    enc = encoder_outputs.astype(jnp.float32)            # native (T, B, H), NO transpose
    if B_pad != B or T_pad != T:
        enc = jnp.pad(enc, ((0, T_pad - T), (0, B_pad - B), (0, 0)))
    if B_pad != B:
        hid2 = jnp.pad(hid2, ((0, B_pad - B), (0, 0)))

    grid = (B_pad // block_b, T_pad // block_t)
    kernel = functools.partial(_attn_kernel, T)

    def _const_spec(shape, single_buffer):
        idx = lambda i, j: (0,) * len(shape)
        if single_buffer:
            # Grid-invariant operand: never re-DMA'd, so one buffer is enough.
            return pl.BlockSpec(shape, idx, pipeline_mode=pl.Buffered(1))
        return pl.BlockSpec(shape, idx)

    def _run(single_buffer_invariants):
        return pl.pallas_call(
            kernel,
            out_shape=jax.ShapeDtypeStruct((B_pad, T_pad), jnp.float32),
            grid_spec=pltpu.PrefetchScalarGridSpec(
                num_scalar_prefetch=0,
                grid=grid,
                in_specs=[
                    pl.BlockSpec((block_b, H), lambda i, j: (i, 0)),           # hidden rows
                    pl.BlockSpec((block_t, block_b, H), lambda i, j: (j, i, 0)),  # enc tile (T,B,H)
                    _const_spec((H, H), single_buffer_invariants),             # W1^T
                    _const_spec((H, H), single_buffer_invariants),             # W2^T
                    _const_spec((1, H), single_buffer_invariants),             # bias
                    _const_spec((1, H), single_buffer_invariants),             # v
                ],
                out_specs=pl.BlockSpec((block_b, T_pad), lambda i, j: (i, 0)),  # lane-dense
                scratch_shapes=[
                    pltpu.VMEM((block_b, H), jnp.float32),     # hidden projection + bias
                    pltpu.VMEM((T_pad, block_b), jnp.float32), # per-block scores accumulator
                ],
            ),
            compiler_params=pltpu.CompilerParams(
                dimension_semantics=("parallel", "arbitrary"),
                vmem_limit_bytes=int(vmem_cap * 0.75),
            ),
        )(hid2, enc, w1t, w2t, bias2, v2)

    try:
        out2d = _run(True)
    except Exception:
        # pipeline_mode=pl.Buffered(1) unsupported on this jax/Mosaic build:
        # fall back to default double-buffered invariant operands.
        out2d = _run(False)

    # TODO(synk): if profiling shows the EUP slot binding on v6e/v7x, compute the tanh
    # in bf16 (keep the v-contraction / softmax in f32).
    return out2d[:B, :T][:, None, :]                                    # (B, 1, T)


def attn_reference(hidden, encoder_outputs, weight, bias, v):
    """Pure-JAX (f32) reference replicating the PyTorch forward."""
    T, B, H = encoder_outputs.shape
    Hrep = jnp.transpose(jnp.tile(hidden, (T, 1, 1)), (1, 0, 2))   # (B, T, H)
    enc = jnp.transpose(encoder_outputs, (1, 0, 2))                # (B, T, H)
    cat = jnp.concatenate([Hrep, enc], axis=2)                     # (B, T, 2H)
    energy = jnp.tanh(cat @ weight.T + bias)                       # (B, T, H)
    scores = jnp.einsum("bth,h->bt", energy, v)                    # (B, T)
    return jax.nn.softmax(scores, axis=1)[:, None, :]              # (B, 1, T)


if __name__ == "__main__":
    # B not a multiple of the batch block and T not a multiple of the T block:
    # exercises batch padding, T padding + masking, and a 2x2 grid.
    B, T, H = 13, 12, 32
    key = jax.random.PRNGKey(0)
    k_hid, k_enc, k_w, k_b, k_v = jax.random.split(key, 5)

    # Parameter init mimicking the PyTorch module:
    # nn.Linear(2H, H): U(-1/sqrt(2H), 1/sqrt(2H)); v ~ N(0, 1/sqrt(H)).
    lin_bound = 1.0 / math.sqrt(2 * H)
    weight = jax.random.uniform(k_w, (H, 2 * H), jnp.float32, -lin_bound, lin_bound)
    bias = jax.random.uniform(k_b, (H,), jnp.float32, -lin_bound, lin_bound)
    v = (1.0 / math.sqrt(H)) * jax.random.normal(k_v, (H,), jnp.float32)

    hidden = jax.random.normal(k_hid, (1, B, H), jnp.float32)           # (layers*dirs=1, B, H)
    encoder_outputs = jax.random.normal(k_enc, (T, B, H), jnp.float32)  # (T, B, H)

    ref = attn_reference(hidden, encoder_outputs, weight, bias, v)

    # 1) explicit small blocks: multi-step grid in both axes + padding/masking paths.
    out = attn_forward(hidden, encoder_outputs, weight, bias, v, block_b=8, block_t=8)
    out = jax.block_until_ready(out)
    assert out.shape == (B, 1, T)
    assert jnp.allclose(out, ref, atol=2e-2, rtol=2e-2)
    assert jnp.allclose(jnp.sum(out, axis=-1), 1.0, atol=1e-3)

    # 2) auto (VMEM-budgeted) block sizes.
    out_auto = attn_forward(hidden, encoder_outputs, weight, bias, v)
    out_auto = jax.block_until_ready(out_auto)
    assert out_auto.shape == (B, 1, T)
    assert jnp.allclose(out_auto, ref, atol=2e-2, rtol=2e-2)
    assert jnp.allclose(jnp.sum(out_auto, axis=-1), 1.0, atol=1e-3)

    print("KERNEL_OK")
</pallas_src>

<mosaic_0001>
module attributes {stable_mosaic.version = 11 : i64} {
  func.func @_attn_kernel(%arg0: i32, %arg1: i32, %arg2: memref<8x32xf32, #tpu.memory_space<vmem>>, %arg3: memref<8x8x32xf32, #tpu.memory_space<vmem>>, %arg4: memref<32x32xbf16, #tpu.memory_space<vmem>>, %arg5: memref<32x32xbf16, #tpu.memory_space<vmem>>, %arg6: memref<1x32xf32, #tpu.memory_space<vmem>>, %arg7: memref<1x32xf32, #tpu.memory_space<vmem>>, %arg8: memref<8x16xf32, #tpu.memory_space<vmem>>, %arg9: memref<8x32xf32, #tpu.memory_space<vmem>>, %arg10: memref<16x8xf32, #tpu.memory_space<vmem>>) attributes {dimension_semantics = [#tpu.dimension_semantics<parallel>, #tpu.dimension_semantics<arbitrary>], iteration_bounds = array<i64: 2, 2>, scalar_prefetch = 0 : i64, scratch_operands = 2 : i64, tpu.core_type = #tpu.core_type<tc>, window_params = [{transform_indices = @transform_0, window_bounds = array<i64: 8, 32>}, {transform_indices = @transform_1, window_bounds = array<i64: 8, 8, 32>}, {pipeline_mode = #tpu.pipeline_mode<synchronous>, transform_indices = @transform_2, window_bounds = array<i64: 32, 32>}, {pipeline_mode = #tpu.pipeline_mode<synchronous>, transform_indices = @transform_3, window_bounds = array<i64: 32, 32>}, {pipeline_mode = #tpu.pipeline_mode<synchronous>, transform_indices = @transform_4, window_bounds = array<i64: 1, 32>}, {pipeline_mode = #tpu.pipeline_mode<synchronous>, transform_indices = @transform_5, window_bounds = array<i64: 1, 32>}, {transform_indices = @transform_6, window_bounds = array<i64: 8, 16>}]} {
    %c0_i32 = arith.constant 0 : i32
    %0 = arith.cmpi eq, %arg1, %c0_i32 : i32
    %1 = arith.extui %0 : i1 to i32
    %c0_i32_0 = arith.constant 0 : i32
    %2 = arith.cmpi ne, %1, %c0_i32_0 : i32
    scf.if %2 {
      %c0_12 = arith.constant 0 : index
      %c0_13 = arith.constant 0 : index
      %26 = vector.load %arg2[%c0_12, %c0_13] : memref<8x32xf32, #tpu.memory_space<vmem>>, vector<8x32xf32>
      %27 = arith.truncf %26 : vector<8x32xf32> to vector<8x32xbf16>
      %c0_14 = arith.constant 0 : index
      %c0_15 = arith.constant 0 : index
      %28 = vector.load %arg4[%c0_14, %c0_15] : memref<32x32xbf16, #tpu.memory_space<vmem>>, vector<32x32xbf16>
      %cst_16 = arith.constant dense<0.000000e+00> : vector<8x32xf32>
      %29 = tpu.matmul %27, %28, %cst_16 {dimension_numbers = #tpu.dot_dimension_numbers<[1], [0], [0], [1], [0, 0, 1, 1], [], []>} : vector<8x32xbf16>, vector<32x32xbf16>, vector<8x32xf32> -> vector<8x32xf32>
      %c0_17 = arith.constant 0 : index
      %c0_18 = arith.constant 0 : index
      %30 = vector.load %arg6[%c0_17, %c0_18] : memref<1x32xf32, #tpu.memory_space<vmem>>, vector<1x32xf32>
      %31 = vector.broadcast %30 : vector<1x32xf32> to vector<8x32xf32>
      %32 = arith.addf %29, %31 : vector<8x32xf32>
      %c0_19 = arith.constant 0 : index
      %c0_20 = arith.constant 0 : index
      %33 = vector.load %arg9[%c0_19, %c0_20] : memref<8x32xf32, #tpu.memory_space<vmem>>, vector<8x32xf32>
      tpu.vector_store %arg9[%c0_19, %c0_20], %32 {strides = array<i32>} : memref<8x32xf32, #tpu.memory_space<vmem>>, vector<8x32xf32>,
    } else {
    }
    %c0 = arith.constant 0 : index
    %c0_1 = arith.constant 0 : index
    %c0_2 = arith.constant 0 : index
    %3 = vector.load %arg3[%c0, %c0_1, %c0_2] : memref<8x8x32xf32, #tpu.memory_space<vmem>>, vector<8x8x32xf32>
    %4 = arith.truncf %3 : vector<8x8x32xf32> to vector<8x8x32xbf16>
    %5 = vector.shape_cast %4 : vector<8x8x32xbf16> to vector<64x32xbf16>
    %c0_3 = arith.constant 0 : index
    %c0_4 = arith.constant 0 : index
    %6 = vector.load %arg5[%c0_3, %c0_4] : memref<32x32xbf16, #tpu.memory_space<vmem>>, vector<32x32xbf16>
    %cst = arith.constant dense<0.000000e+00> : vector<64x32xf32>
    %7 = tpu.matmul %5, %6, %cst {dimension_numbers = #tpu.dot_dimension_numbers<[1], [0], [0], [1], [0, 0, 1, 1], [], []>} : vector<64x32xbf16>, vector<32x32xbf16>, vector<64x32xf32> -> vector<64x32xf32>
    %8 = vector.shape_cast %7 : vector<64x32xf32> to vector<8x8x32xf32>
    %c0_5 = arith.constant 0 : index
    %c0_6 = arith.constant 0 : index
    %9 = vector.load %arg9[%c0_5, %c0_6] : memref<8x32xf32, #tpu.memory_space<vmem>>, vector<8x32xf32>
    %10 = vector.shape_cast %9 : vector<8x32xf32> to vector<1x8x32xf32>
    %11 = vector.broadcast %10 : vector<1x8x32xf32> to vector<8x8x32xf32>
    %12 = arith.addf %8, %11 : vector<8x8x32xf32>
    %13 = math.tanh %12 : vector<8x8x32xf32>
    %c0_7 = arith.constant 0 : index
    %c0_8 = arith.constant 0 : index
    %14 = vector.load %arg7[%c0_7, %c0_8] : memref<1x32xf32, #tpu.memory_space<vmem>>, vector<1x32xf32>
    %15 = vector.shape_cast %14 : vector<1x32xf32> to vector<1x1x32xf32>
    %16 = vector.broadcast %15 : vector<1x1x32xf32> to vector<8x8x32xf32>
    %17 = arith.mulf %13, %16 : vector<8x8x32xf32>
    %cst_9 = arith.constant dense<0.000000e+00> : vector<8x8xf32>
    %18 = vector.multi_reduction <add>, %17, %cst_9 [2] : vector<8x8x32xf32> to vector<8x8xf32>
    %c8_i32 = arith.constant 8 : i32
    %19 = arith.muli %arg1, %c8_i32 : i32
    %20 = tpu.assume_multiple %19, 8 : i32
    %21 = arith.index_cast %20 : i32 to index
    %c0_10 = arith.constant 0 : index
    %22 = vector.load %arg10[%21, %c0_10] : memref<16x8xf32, #tpu.memory_space<vmem>>, vector<8x8xf32>
    tpu.vector_store %arg10[%21, %c0_10], %18 {strides = array<i32>} : memref<16x8xf32, #tpu.memory_space<vmem>>, vector<8x8xf32>,
    %c1_i32 = arith.constant 1 : i32
    %23 = arith.cmpi eq, %arg1, %c1_i32 : i32
    %24 = arith.extui %23 : i1 to i32
    %c0_i32_11 = arith.constant 0 : i32
    %25 = arith.cmpi ne, %24, %c0_i32_11 : i32
    scf.if %25 {
      %c0_12 = arith.constant 0 : index
      %c0_13 = arith.constant 0 : index
      %26 = vector.load %arg10[%c0_12, %c0_13] : memref<16x8xf32, #tpu.memory_space<vmem>>, vector<16x8xf32>
      %27 = tpu.transpose %26, [1, 0] : vector<16x8xf32> -> vector<8x16xf32>
      %28 = tpu.iota {dimensions = array<i32: 1>} : vector<8x16xi32>
      %c12_i32 = arith.constant 12 : i32
      %29 = vector.broadcast %c12_i32 : i32 to vector<8x16xi32>
      %30 = arith.cmpi slt, %28, %29 : vector<8x16xi32>
      %cst_14 = arith.constant -1.000000e+30 : f32
      %31 = vector.broadcast %cst_14 : f32 to vector<8x16xf32>
      %32 = arith.select %30, %27, %31 : vector<8x16xi1>, vector<8x16xf32>
      %cst_15 = arith.constant dense<0xFF800000> : vector<8xf32>
      %33 = vector.multi_reduction <maximumf>, %32, %cst_15 [1] : vector<8x16xf32> to vector<8xf32>
      %34 = vector.shape_cast %33 : vector<8xf32> to vector<8x1xf32>
      %35 = vector.broadcast %34 : vector<8x1xf32> to vector<8x16xf32>
      %36 = arith.subf %32, %35 : vector<8x16xf32>
      %37 = math.exp %36 : vector<8x16xf32>
      %cst_16 = arith.constant dense<0.000000e+00> : vector<8xf32>
      %38 = vector.multi_reduction <add>, %37, %cst_16 [1] : vector<8x16xf32> to vector<8xf32>
      %39 = vector.shape_cast %38 : vector<8xf32> to vector<8x1xf32>
      %40 = vector.broadcast %39 : vector<8x1xf32> to vector<8x16xf32>
      %41 = arith.divf %37, %40 : vector<8x16xf32>
      %c0_17 = arith.constant 0 : index
      %c0_18 = arith.constant 0 : index
      %42 = vector.load %arg8[%c0_17, %c0_18] : memref<8x16xf32, #tpu.memory_space<vmem>>, vector<8x16xf32>
      tpu.vector_store %arg8[%c0_17, %c0_18], %41 {strides = array<i32>} : memref<8x16xf32, #tpu.memory_space<vmem>>, vector<8x16xf32>,
    } else {
    }
    return
  }
  func.func @transform_0(%arg0: i32, %arg1: i32) -> (i32, i32) {
    %c0_i32 = arith.constant 0 : i32
    %c0_i32_0 = arith.constant 0 : i32
    return %arg0, %c0_i32 : i32, i32
  }
  func.func @transform_1(%arg0: i32, %arg1: i32) -> (i32, i32, i32) {
    %c0_i32 = arith.constant 0 : i32
    %c0_i32_0 = arith.constant 0 : i32
    return %arg1, %arg0, %c0_i32 : i32, i32, i32
  }
  func.func @transform_2(%arg0: i32, %arg1: i32) -> (i32, i32) {
    %c0_i32 = arith.constant 0 : i32
    %c0_i32_0 = arith.constant 0 : i32
    %c0_i32_1 = arith.constant 0 : i32
    return %c0_i32, %c0_i32_0 : i32, i32
  }
  func.func @transform_3(%arg0: i32, %arg1: i32) -> (i32, i32) {
    %c0_i32 = arith.constant 0 : i32
    %c0_i32_0 = arith.constant 0 : i32
    %c0_i32_1 = arith.constant 0 : i32
    return %c0_i32, %c0_i32_0 : i32, i32
  }
  func.func @transform_4(%arg0: i32, %arg1: i32) -> (i32, i32) {
    %c0_i32 = arith.constant 0 : i32
    %c0_i32_0 = arith.constant 0 : i32
    %c0_i32_1 = arith.constant 0 : i32
    return %c0_i32, %c0_i32_0 : i32, i32
  }
  func.func @transform_5(%arg0: i32, %arg1: i32) -> (i32, i32) {
    %c0_i32 = arith.constant 0 : i32
    %c0_i32_0 = arith.constant 0 : i32
    %c0_i32_1 = arith.constant 0 : i32
    return %c0_i32, %c0_i32_0 : i32, i32
  }
  func.func @transform_6(%arg0: i32, %arg1: i32) -> (i32, i32) {
    %c0_i32 = arith.constant 0 : i32
    %c0_i32_0 = arith.constant 0 : i32
    return %arg0, %c0_i32 : i32, i32
  }
}

module attributes {stable_mosaic.version = 11 : i64} {
  func.func @_attn_kernel(%arg0: i32, %arg1: i32, %arg2: memref<8x32xf32, #tpu.memory_space<vmem>>, %arg3: memref<8x8x32xf32, #tpu.memory_space<vmem>>, %arg4: memref<32x32xbf16, #tpu.memory_space<vmem>>, %arg5: memref<32x32xbf16, #tpu.memory_space<vmem>>, %arg6: memref<1x32xf32, #tpu.memory_space<vmem>>, %arg7: memref<1x32xf32, #tpu.memory_space<vmem>>, %arg8: memref<8x16xf32, #tpu.memory_space<vmem>>, %arg9: memref<8x32xf32, #tpu.memory_space<vmem>>, %arg10: memref<16x8xf32, #tpu.memory_space<vmem>>) attributes {dimension_semantics = [#tpu.dimension_semantics<parallel>, #tpu.dimension_semantics<arbitrary>], iteration_bounds = array<i64: 2, 2>, scalar_prefetch = 0 : i64, scratch_operands = 2 : i64, tpu.core_type = #tpu.core_type<tc>, window_params = [{transform_indices = @transform_0, window_bounds = array<i64: 8, 32>}, {transform_indices = @transform_1, window_bounds = array<i64: 8, 8, 32>}, {pipeline_mode = #tpu.pipeline_mode<synchronous>, transform_indices = @transform_2, window_bounds = array<i64: 32, 32>}, {pipeline_mode = #tpu.pipeline_mode<synchronous>, transform_indices = @transform_3, window_bounds = array<i64: 32, 32>}, {pipeline_mode = #tpu.pipeline_mode<synchronous>, transform_indices = @transform_4, window_bounds = array<i64: 1, 32>}, {pipeline_mode = #tpu.pipeline_mode<synchronous>, transform_indices = @transform_5, window_bounds = array<i64: 1, 32>}, {transform_indices = @transform_6, window_bounds = array<i64: 8, 16>}]} {
    %c0_i32 = arith.constant 0 : i32
    %0 = arith.cmpi eq, %arg1, %c0_i32 : i32
    %1 = arith.extui %0 : i1 to i32
    %c0_i32_0 = arith.constant 0 : i32
    %2 = arith.cmpi ne, %1, %c0_i32_0 : i32
    scf.if %2 {
      %c0_12 = arith.constant 0 : index
      %c0_13 = arith.constant 0 : index
      %26 = vector.load %arg2[%c0_12, %c0_13] : memref<8x32xf32, #tpu.memory_space<vmem>>, vector<8x32xf32>
      %27 = arith.truncf %26 : vector<8x32xf32> to vector<8x32xbf16>
      %c0_14 = arith.constant 0 : index
      %c0_15 = arith.constant 0 : index
      %28 = vector.load %arg4[%c0_14, %c0_15] : memref<32x32xbf16, #tpu.memory_space<vmem>>, vector<32x32xbf16>
      %cst_16 = arith.constant dense<0.000000e+00> : vector<8x32xf32>
      %29 = tpu.matmul %27, %28, %cst_16 {dimension_numbers = #tpu.dot_dimension_numbers<[1], [0], [0], [1], [0, 0, 1, 1], [], []>} : vector<8x32xbf16>, vector<32x32xbf16>, vector<8x32xf32> -> vector<8x32xf32>
      %c0_17 = arith.constant 0 : index
      %c0_18 = arith.constant 0 : index
      %30 = vector.load %arg6[%c0_17, %c0_18] : memref<1x32xf32, #tpu.memory_space<vmem>>, vector<1x32xf32>
      %31 = vector.broadcast %30 : vector<1x32xf32> to vector<8x32xf32>
      %32 = arith.addf %29, %31 : vector<8x32xf32>
      %c0_19 = arith.constant 0 : index
      %c0_20 = arith.constant 0 : index
      %33 = vector.load %arg9[%c0_19, %c0_20] : memref<8x32xf32, #tpu.memory_space<vmem>>, vector<8x32xf32>
      tpu.vector_store %arg9[%c0_19, %c0_20], %32 {strides = array<i32>} : memref<8x32xf32, #tpu.memory_space<vmem>>, vector<8x32xf32>,
    } else {
    }
    %c0 = arith.constant 0 : index
    %c0_1 = arith.constant 0 : index
    %c0_2 = arith.constant 0 : index
    %3 = vector.load %arg3[%c0, %c0_1, %c0_2] : memref<8x8x32xf32, #tpu.memory_space<vmem>>, vector<8x8x32xf32>
    %4 = arith.truncf %3 : vector<8x8x32xf32> to vector<8x8x32xbf16>
    %5 = vector.shape_cast %4 : vector<8x8x32xbf16> to vector<64x32xbf16>
    %c0_3 = arith.constant 0 : index
    %c0_4 = arith.constant 0 : index
    %6 = vector.load %arg5[%c0_3, %c0_4] : memref<32x32xbf16, #tpu.memory_space<vmem>>, vector<32x32xbf16>
    %cst = arith.constant dense<0.000000e+00> : vector<64x32xf32>
    %7 = tpu.matmul %5, %6, %cst {dimension_numbers = #tpu.dot_dimension_numbers<[1], [0], [0], [1], [0, 0, 1, 1], [], []>} : vector<64x32xbf16>, vector<32x32xbf16>, vector<64x32xf32> -> vector<64x32xf32>
    %8 = vector.shape_cast %7 : vector<64x32xf32> to vector<8x8x32xf32>
    %c0_5 = arith.constant 0 : index
    %c0_6 = arith.constant 0 : index
    %9 = vector.load %arg9[%c0_5, %c0_6] : memref<8x32xf32, #tpu.memory_space<vmem>>, vector<8x32xf32>
    %10 = vector.shape_cast %9 : vector<8x32xf32> to vector<1x8x32xf32>
    %11 = vector.broadcast %10 : vector<1x8x32xf32> to vector<8x8x32xf32>
    %12 = arith.addf %8, %11 : vector<8x8x32xf32>
    %13 = math.tanh %12 : vector<8x8x32xf32>
    %c0_7 = arith.constant 0 : index
    %c0_8 = arith.constant 0 : index
    %14 = vector.load %arg7[%c0_7, %c0_8] : memref<1x32xf32, #tpu.memory_space<vmem>>, vector<1x32xf32>
    %15 = vector.shape_cast %14 : vector<1x32xf32> to vector<1x1x32xf32>
    %16 = vector.broadcast %15 : vector<1x1x32xf32> to vector<8x8x32xf32>
    %17 = arith.mulf %13, %16 : vector<8x8x32xf32>
    %cst_9 = arith.constant dense<0.000000e+00> : vector<8x8xf32>
    %18 = vector.multi_reduction <add>, %17, %cst_9 [2] : vector<8x8x32xf32> to vector<8x8xf32>
    %c8_i32 = arith.constant 8 : i32
    %19 = arith.muli %arg1, %c8_i32 : i32
    %20 = tpu.assume_multiple %19, 8 : i32
    %21 = arith.index_cast %20 : i32 to index
    %c0_10 = arith.constant 0 : index
    %22 = vector.load %arg10[%21, %c0_10] : memref<16x8xf32, #tpu.memory_space<vmem>>, vector<8x8xf32>
    tpu.vector_store %arg10[%21, %c0_10], %18 {strides = array<i32>} : memref<16x8xf32, #tpu.memory_space<vmem>>, vector<8x8xf32>,
    %c1_i32 = arith.constant 1 : i32
    %23 = arith.cmpi eq, %arg1, %c1_i32 : i32
    %24 = arith.extui %23 : i1 to i32
    %c0_i32_11 = arith.constant 0 : i32
    %25 = arith.cmpi ne, %24, %c0_i32_11 : i32
    scf.if %25 {
      %c0_12 = arith.constant 0 : index
      %c0_13 = arith.constant 0 : index
      %26 = vector.load %arg10[%c0_12, %c0_13] : memref<16x8xf32, #tpu.memory_space<vmem>>, vector<16x8xf32>
      %27 = tpu.transpose %26, [1, 0] : vector<16x8xf32> -> vector<8x16xf32>
      %28 = tpu.iota {dimensions = array<i32: 1>} : vector<8x16xi32>
      %c12_i32 = arith.constant 12 : i32
      %29 = vector.broadcast %c12_i32 : i32 to vector<8x16xi32>
      %30 = arith.cmpi slt, %28, %29 : vector<8x16xi32>
      %cst_14 = arith.constant -1.000000e+30 : f32
      %31 = vector.broadcast %cst_14 : f32 to vector<8x16xf32>
      %32 = arith.select %30, %27, %31 : vector<8x16xi1>, vector<8x16xf32>
      %cst_15 = arith.constant dense<0xFF800000> : vector<8xf32>
      %33 = vector.multi_reduction <maximumf>, %32, %cst_15 [1] : vector<8x16xf32> to vector<8xf32>
      %34 = vector.shape_cast %33 : vector<8xf32> to vector<8x1xf32>
      %35 = vector.broadcast %34 : vector<8x1xf32> to vector<8x16xf32>
      %36 = arith.subf %32, %35 : vector<8x16xf32>
      %37 = math.exp %36 : vector<8x16xf32>
      %cst_16 = arith.constant dense<0.000000e+00> : vector<8xf32>
      %38 = vector.multi_reduction <add>, %37, %cst_16 [1] : vector<8x16xf32> to vector<8xf32>
      %39 = vector.shape_cast %38 : vector<8xf32> to vector<8x1xf32>
      %40 = vector.broadcast %39 : vector<8x1xf32> to vector<8x16xf32>
      %41 = arith.divf %37, %40 : vector<8x16xf32>
      %c0_17 = arith.constant 0 : index
      %c0_18 = arith.constant 0 : index
      %42 = vector.load %arg8[%c0_17, %c0_18] : memref<8x16xf32, #tpu.memory_space<vmem>>, vector<8x16xf32>
      tpu.vector_store %arg8[%c0_17, %c0_18], %41 {strides = array<i32>} : memref<8x16xf32, #tpu.memory_space<vmem>>, vector<8x16xf32>,
    } else {
    }
    return
  }
  func.func @transform_0(%arg0: i32, %arg1: i32) -> (i32, i32) {
    %c0_i32 = arith.constant 0 : i32
    %c0_i32_0 = arith.constant 0 : i32
    return %arg0, %c0_i32 : i32, i32
  }
  func.func @transform_1(%arg0: i32, %arg1: i32) -> (i32, i32, i32) {
    %c0_i32 = arith.constant 0 : i32
    %c0_i32_0 = arith.constant 0 : i32
    return %arg1, %arg0, %c0_i32 : i32, i32, i32
  }
  func.func @transform_2(%arg0: i32, %arg1: i32) -> (i32, i32) {
    %c0_i32 = arith.constant 0 : i32
    %c0_i32_0 = arith.constant 0 : i32
    %c0_i32_1 = arith.constant 0 : i32
    return %c0_i32, %c0_i32_0 : i32, i32
  }
  func.func @transform_3(%arg0: i32, %arg1: i32) -> (i32, i32) {
    %c0_i32 = arith.constant 0 : i32
    %c0_i32_0 = arith.constant 0 : i32
    %c0_i32_1 = arith.constant 0 : i32
    return %c0_i32, %c0_i32_0 : i32, i32
  }
  func.func @transform_4(%arg0: i32, %arg1: i32) -> (i32, i32) {
    %c0_i32 = arith.constant 0 : i32
    %c0_i32_0 = arith.constant 0 : i32
    %c0_i32_1 = arith.constant 0 : i32
    return %c0_i32, %c0_i32_0 : i32, i32
  }
  func.func @transform_5(%arg0: i32, %arg1: i32) -> (i32, i32) {
    %c0_i32 = arith.constant 0 : i32
    %c0_i32_0 = arith.constant 0 : i32
    %c0_i32_1 = arith.constant 0 : i32
    return %c0_i32, %c0_i32_0 : i32, i32
  }
  func.func @transform_6(%arg0: i32, %arg1: i32) -> (i32, i32) {
    %c0_i32 = arith.constant 0 : i32
    %c0_i32_0 = arith.constant 0 : i32
    return %arg0, %c0_i32 : i32, i32
  }
}

</mosaic_0001>

<llo_original>
// kernel: tpu_custom_call.1
$region0: #{tpu_custom_call.1}
  #allocation0 [shape = 'u32[]', space=smem, size = 0x4, offset = 0x4, fixed_abs, tag = 'smem constant byte address 0x4 - core index']
  #allocation1 [shape = 'u32[144,128]{1,0:T(1,128)}', space=vmem, size = 0x12000, scoped, tag = 'internal scratch']
  #allocation2 [shape = 'f32[8,32]{1,0:T(8,128)}', space=vmem, size = 0x1000, scoped, tag = 'scratch operand']
  #allocation3 [shape = 'f32[16,8]{1,0:T(8,128)}', space=vmem, size = 0x2000, scoped, tag = 'scratch operand']
  %s0 = inlined_call_operand.hbm [shape: f32[16,32], index: 0, kind: input, shape index: {}]
  %s1 = inlined_call_operand.hbm [shape: f32[16,16,32], index: 1, kind: input, shape index: {}]
  %s2 = inlined_call_operand.hbm [shape: bf16[32,32], index: 2, kind: input, shape index: {}]
  %s3 = inlined_call_operand.hbm [shape: bf16[32,32], index: 3, kind: input, shape index: {}]
  %s4 = inlined_call_operand.vmem [shape: f32[1,32], index: 4, kind: input, shape index: {}]
  %s5 = inlined_call_operand.vmem [shape: f32[1,32], index: 5, kind: input, shape index: {}]
  %s6 = inlined_call_operand.hbm [shape: f32[16,16], index: 6, kind: output, shape index: {}]
  %s7 = sld [smem:[#allocation0]]
  $region81: #{tpu_custom_call.1} parent=0
    _
  %s9 = ssub.s32 1, %s7
  %s10 = scalar_select 0, %s9, %s7
  $region1: #{tpu_custom_call.1} parent=0
    #allocation4 [shape = 'u8[8192]{0}', space=vmem, size = 0x2000, scoped, tag = 'input window, operand 0']
    #allocation5 [shape = 's32[2]{0}', space=sflag, size = 0x8, scoped, tag = 'scoped memory for tpu_custom_call.1']
    #allocation6 [shape = 's32[2]{0}', space=sflag, size = 0x8, scoped, tag = 'scoped memory for tpu_custom_call.1']
    #allocation7 [shape = 'u8[65536]{0}', space=vmem, size = 0x10000, scoped, tag = 'input window, operand 1']
    #allocation8 [shape = 's32[2]{0}', space=sflag, size = 0x8, scoped, tag = 'scoped memory for tpu_custom_call.1']
    #allocation9 [shape = 'u8[8192]{0}', space=vmem, size = 0x2000, scoped, tag = 'input window, operand 2, single buffered']
    #allocation10 [shape = 'u8[8192]{0}', space=vmem, size = 0x2000, scoped, tag = 'input window, operand 3, single buffered']
    #allocation11 [shape = 's32[1]{0}', space=sflag, size = 0x4, scoped, tag = 'scoped memory for tpu_custom_call.1']
    #allocation12 [shape = 'u8[8192]{0}', space=vmem, size = 0x2000, scoped, tag = 'output window, operand 0']
    %11 = vsyncpa [#allocation5], 0
    %s12 = scalar_lea.sflag [#allocation5], 1
    %13 = vsyncpa %s12, 0
    %14 = vsyncpa [#allocation8], 0
    %s15 = scalar_lea.sflag [#allocation8], 1
    %16 = vsyncpa %s15, 0
    %17 = vsyncpa [#allocation11], 0
    %18 = vsyncpa [#allocation6], 0
    %s19 = scalar_lea.sflag [#allocation6], 1
    %20 = vsyncpa %s19, 0
    loop: start=0, step=1, limit=6
    $region2: #{tpu_custom_call.1} parent=1 // loop_pre_header
      _
    $region3: #{tpu_custom_call.1} parent=1 // loop_header
      %s22 = sphi 0, %s26
      %p23 = scmp.ge.s32.totalorder %s22, 6
      %s29 = sphi 0, %s41
      %s30 = sphi 0, %s37
      %s31 = sphi 0, %s29
      %s32 = sphi 0, %s30
      %s33 = sphi 0, %s31
      %s34 = sphi 0, %s32
      %s44 = sphi 0, %s46
      %s47 = sphi 0, %s44
      %s48 = sphi 0, %s47
      %s64 = sphi 0, %s48
      %s72 = sphi 0, %s74
      %s75 = sphi 0, %s72
      %s76 = sphi 0, %s75
      %s92 = sphi 0, %s76
      %s96 = sphi 0, %s96
      %s98 = sphi 0, %s96
      %s99 = sphi 0, %s98
      %s113 = sphi 0, %s99
      %s117 = sphi 0, %s117
      %s119 = sphi 0, %s117
      %s120 = sphi 0, %s119
      %s134 = sphi 0, %s120
      %s138 = sphi 0, %s138
      %s140 = sphi 0, %s138
      %s141 = sphi 0, %s140
      %s155 = sphi 0, %s141
      %s159 = sphi 0, %s159
      %s161 = sphi 0, %s159
      %s162 = sphi 0, %s161
      %s176 = sphi 0, %s162
      %s182 = sphi 0, %s184
      %s185 = sphi 0, %s182
      %s186 = sphi 0, %s185
      %s202 = sphi 0, %s186
    $region4: #{tpu_custom_call.1} parent=1 // loop_header_branch
      %25 = sbr.rel (%p23) target = $region8
    $region5: #{tpu_custom_call.1} parent=1 // loop_body
      %s27 = ssub.s32 %s22, 1
      %s28 = ssub.s32 %s22, 2
      %s35 = sadd.s32 1, %s30
      %p36 = scmp.ge.s32.totalorder %s35, 2
      %s37 = scalar_select %p36, 0, %s35
      %s38 = sadd.s32 1, %s29
      %s39 = scalar_select %p36, %s38, %s29
      %p40 = scmp.ge.s32.totalorder %s39, 2
      %s41 = scalar_select %p40, 0, %s39
      %s42 = ssub.s32 %s29, %s41
      %p43 = scmp.eq.s32.totalorder %s42, 0
      %s45 = sadd.s32 %s44, 1
      %s46 = scalar_select %p43, %s44, %s45
      %p49 = pneg %p43
      %p50 = scmp.eq.s32.totalorder %s22, 3
      %p51 = por %p49, %p50
      %p52 = scmp.ne.s32.totalorder %s44, %s47
      %p53 = scmp.eq.s32.totalorder %s22, 0
      %p54 = por %p52, %p53
      %p55 = scmp.ne.s32.totalorder %s44, %s47
      %p56 = scmp.eq.s32.totalorder %s27, 3
      %p57 = por %p55, %p56
      %p58 = scmp.ne.s32.totalorder %s47, %s48
      %p59 = scmp.eq.s32.totalorder %s27, 0
      %p60 = por %p58, %p59
      %p61 = scmp.ne.s32.totalorder %s47, %s48
      %p62 = scmp.eq.s32.totalorder %s28, 3
      %p63 = por %p61, %p62
      %p65 = scmp.ne.s32.totalorder %s48, %s64
      %p66 = scmp.eq.s32.totalorder %s28, 0
      %p67 = por %p65, %p66
      %s68 = ssub.s32 %s30, %s37
      %s69 = ssub.s32 %s29, %s41
      %s70 = sor.u32 %s68, %s69
      %p71 = scmp.eq.s32.totalorder %s70, 0
      %s73 = sadd.s32 %s72, 1
      %s74 = scalar_select %p71, %s72, %s73
      %p77 = pneg %p71
      %p78 = scmp.eq.s32.totalorder %s22, 3
      %p79 = por %p77, %p78
      %p80 = scmp.ne.s32.totalorder %s72, %s75
      %p81 = scmp.eq.s32.totalorder %s22, 0
      %p82 = por %p80, %p81
      %p83 = scmp.ne.s32.totalorder %s72, %s75
      %p84 = scmp.eq.s32.totalorder %s27, 3
      %p85 = por %p83, %p84
      %p86 = scmp.ne.s32.totalorder %s75, %s76
      %p87 = scmp.eq.s32.totalorder %s27, 0
      %p88 = por %p86, %p87
      %p89 = scmp.ne.s32.totalorder %s75, %s76
      %p90 = scmp.eq.s32.totalorder %s28, 3
      %p91 = por %p89, %p90
      %p93 = scmp.ne.s32.totalorder %s76, %s92
      %p94 = scmp.eq.s32.totalorder %s28, 0
      %p95 = por %p93, %p94
      %s97 = sadd.s32 %s96, 1
      %p100 = scmp.eq.s32.totalorder %s22, 3
      %p101 = scmp.ne.s32.totalorder %s96, %s98
      %p102 = scmp.eq.s32.totalorder %s22, 0
      %p103 = por %p101, %p102
      %p104 = scmp.ne.s32.totalorder %s96, %s98
      %p105 = scmp.eq.s32.totalorder %s27, 3
      %p106 = por %p104, %p105
      %p107 = scmp.ne.s32.totalorder %s98, %s99
      %p108 = scmp.eq.s32.totalorder %s27, 0
      %p109 = por %p107, %p108
      %p110 = scmp.ne.s32.totalorder %s98, %s99
      %p111 = scmp.eq.s32.totalorder %s28, 3
      %p112 = por %p110, %p111
      %p114 = scmp.ne.s32.totalorder %s99, %s113
      %p115 = scmp.eq.s32.totalorder %s28, 0
      %p116 = por %p114, %p115
      %s118 = sadd.s32 %s117, 1
      %p121 = scmp.eq.s32.totalorder %s22, 3
      %p122 = scmp.ne.s32.totalorder %s117, %s119
      %p123 = scmp.eq.s32.totalorder %s22, 0
      %p124 = por %p122, %p123
      %p125 = scmp.ne.s32.totalorder %s117, %s119
      %p126 = scmp.eq.s32.totalorder %s27, 3
      %p127 = por %p125, %p126
      %p128 = scmp.ne.s32.totalorder %s119, %s120
      %p129 = scmp.eq.s32.totalorder %s27, 0
      %p130 = por %p128, %p129
      %p131 = scmp.ne.s32.totalorder %s119, %s120
      %p132 = scmp.eq.s32.totalorder %s28, 3
      %p133 = por %p131, %p132
      %p135 = scmp.ne.s32.totalorder %s120, %s134
      %p136 = scmp.eq.s32.totalorder %s28, 0
      %p137 = por %p135, %p136
      %s139 = sadd.s32 %s138, 1
      %p142 = scmp.eq.s32.totalorder %s22, 3
      %p143 = scmp.ne.s32.totalorder %s138, %s140
      %p144 = scmp.eq.s32.totalorder %s22, 0
      %p145 = por %p143, %p144
      %p146 = scmp.ne.s32.totalorder %s138, %s140
      %p147 = scmp.eq.s32.totalorder %s27, 3
      %p148 = por %p146, %p147
      %p149 = scmp.ne.s32.totalorder %s140, %s141
      %p150 = scmp.eq.s32.totalorder %s27, 0
      %p151 = por %p149, %p150
      %p152 = scmp.ne.s32.totalorder %s140, %s141
      %p153 = scmp.eq.s32.totalorder %s28, 3
      %p154 = por %p152, %p153
      %p156 = scmp.ne.s32.totalorder %s141, %s155
      %p157 = scmp.eq.s32.totalorder %s28, 0
      %p158 = por %p156, %p157
      %s160 = sadd.s32 %s159, 1
      %p163 = scmp.eq.s32.totalorder %s22, 3
      %p164 = scmp.ne.s32.totalorder %s159, %s161
      %p165 = scmp.eq.s32.totalorder %s22, 0
      %p166 = por %p164, %p165
      %p167 = scmp.ne.s32.totalorder %s159, %s161
      %p168 = scmp.eq.s32.totalorder %s27, 3
      %p169 = por %p167, %p168
      %p170 = scmp.ne.s32.totalorder %s161, %s162
      %p171 = scmp.eq.s32.totalorder %s27, 0
      %p172 = por %p170, %p171
      %p173 = scmp.ne.s32.totalorder %s161, %s162
      %p174 = scmp.eq.s32.totalorder %s28, 3
      %p175 = por %p173, %p174
      %p177 = scmp.ne.s32.totalorder %s162, %s176
      %p178 = scmp.eq.s32.totalorder %s28, 0
      %p179 = por %p177, %p178
      %s180 = ssub.s32 %s29, %s41
      %p181 = scmp.eq.s32.totalorder %s180, 0
      %s183 = sadd.s32 %s182, 1
      %s184 = scalar_select %p181, %s182, %s183
      %p187 = pneg %p181
      %p188 = scmp.eq.s32.totalorder %s22, 3
      %p189 = por %p187, %p188
      %p190 = scmp.ne.s32.totalorder %s182, %s185
      %p191 = scmp.eq.s32.totalorder %s22, 0
      %p192 = por %p190, %p191
      %p193 = scmp.ne.s32.totalorder %s182, %s185
      %p194 = scmp.eq.s32.totalorder %s27, 3
      %p195 = por %p193, %p194
      %p196 = scmp.ne.s32.totalorder %s185, %s186
      %p197 = scmp.eq.s32.totalorder %s27, 0
      %p198 = por %p196, %p197
      %p199 = scmp.ne.s32.totalorder %s185, %s186
      %p200 = scmp.eq.s32.totalorder %s28, 3
      %p201 = por %p199, %p200
      %p203 = scmp.ne.s32.totalorder %s186, %s202
      %p204 = scmp.eq.s32.totalorder %s28, 0
      %p205 = por %p203, %p204
      %p206 = scmp.le.s32.totalorder 1, %s22
      %p207 = scmp.lt.s32.totalorder %s22, 5
      %p208 = pnand %p206, %p207
      %p209 = pneg %p208
      // Predicated region
      $region9: #{tpu_custom_call.1} parent=5 // pred_check
        _
      $region10: #{tpu_custom_call.1} parent=5 // pred_check_branch
        %211 = sbr.rel (%p208) target = $region12
      $region11: #{tpu_custom_call.1} parent=5 // pred_region
        %s212 = ssub.s32 %s22, 1
        // Predicated region
        $region13: #{tpu_custom_call.1} parent=11 // pred_check
          %p213 = pneg %p109
        $region14: #{tpu_custom_call.1} parent=11 // pred_check_branch
          %215 = sbr.rel (%p213) target = $region16
        $region15: #{tpu_custom_call.1} parent=11 // pred_region
          %s217 = ssub.s32 256, 256
          %218 = vsyncadd [#allocation8], %s217
          %s219 = sshll.u32 [#allocation9], 4
          %s220 = int_to_ptr.vmem [resolvable:$true] %s219
          %225 = dma.hbm_to_vmem [thread:$0]  %s2, 256, %s220, [#allocation8], 64, 64, 4
        $region16: #{tpu_custom_call.1} parent=11 // pred_fallthru
          _
        // Predicated region
        $region17: #{tpu_custom_call.1} parent=11 // pred_check
          %p226 = pneg %p130
        $region18: #{tpu_custom_call.1} parent=11 // pred_check_branch
          %228 = sbr.rel (%p226) target = $region20
        $region19: #{tpu_custom_call.1} parent=11 // pred_region
          %s230 = ssub.s32 256, 256
          %231 = vsyncadd [#allocation11], %s230
          %s232 = sshll.u32 [#allocation10], 4
          %s233 = int_to_ptr.vmem [resolvable:$true] %s232
          %238 = dma.hbm_to_vmem [thread:$0]  %s3, 256, %s233, [#allocation11], 64, 64, 4
        $region20: #{tpu_custom_call.1} parent=11 // pred_fallthru
          _
        // Predicated region
        $region21: #{tpu_custom_call.1} parent=11 // pred_check
          %p239 = pneg %p151
        $region22: #{tpu_custom_call.1} parent=11 // pred_check_branch
          %241 = sbr.rel (%p239) target = $region24
        $region23: #{tpu_custom_call.1} parent=11 // pred_region
          _
        $region24: #{tpu_custom_call.1} parent=11 // pred_fallthru
          _
        // Predicated region
        $region25: #{tpu_custom_call.1} parent=11 // pred_check
          %p242 = pneg %p172
        $region26: #{tpu_custom_call.1} parent=11 // pred_check_branch
          %244 = sbr.rel (%p242) target = $region28
        $region27: #{tpu_custom_call.1} parent=11 // pred_region
          _
        $region28: #{tpu_custom_call.1} parent=11 // pred_fallthru
          _
      $region12: #{tpu_custom_call.1} parent=5 // pred_fallthru
        _
      %p245 = scmp.lt.s32.totalorder %s22, 4
      // Predicated region
      $region29: #{tpu_custom_call.1} parent=5 // pred_check
        %p246 = pneg %p245
      $region30: #{tpu_custom_call.1} parent=5 // pred_check_branch
        %248 = sbr.rel (%p246) target = $region32
      $region31: #{tpu_custom_call.1} parent=5 // pred_region
        // Predicated region
        $region33: #{tpu_custom_call.1} parent=31 // pred_check
          %p249 = pneg %p54
        $region34: #{tpu_custom_call.1} parent=31 // pred_check_branch
          %251 = sbr.rel (%p249) target = $region36
        $region35: #{tpu_custom_call.1} parent=31 // pred_region
          %s252 = sand.u32 %s44, 1
          %s253 = scalar_lea.sflag [#allocation5], %s252
          %s254 = sand.u32 %s44, 1
          %s255 = smul.addr %s254, 8
          %s256 = scalar_lea.vmem [#allocation4], %s255
          %s258 = ssub.s32 128, 128
          %259 = vsyncadd %s253, %s258
          %s260 = smul.addr %s29, 128
          %s261 = scalar_lea.hbm %s0, %s260
          %s263 = sshll.u32 %s256, 4
          %s264 = int_to_ptr.vmem [resolvable:$true] %s263
          %266 = dma.hbm_to_vmem [thread:$0]  %s261, 128, %s264, %s253
        $region36: #{tpu_custom_call.1} parent=31 // pred_fallthru
          _
        // Predicated region
        $region37: #{tpu_custom_call.1} parent=31 // pred_check
          %p267 = pneg %p82
        $region38: #{tpu_custom_call.1} parent=31 // pred_check_branch
          %269 = sbr.rel (%p267) target = $region40
        $region39: #{tpu_custom_call.1} parent=31 // pred_region
          %s270 = sand.u32 %s22, 1
          %s271 = scalar_lea.sflag [#allocation8], %s270
          %s272 = sand.u32 %s72, 1
          %s273 = smul.addr %s272, 64
          %s274 = scalar_lea.vmem [#allocation7], %s273
          %s275 = smul.u32 8, %s30
          %s277 = ssub.s32 1024, 1024
          %278 = vsyncadd %s271, %s277
          %s279 = smul.addr %s275, 2
          %s280 = sadd.s32 %s29, %s279
          %s281 = smul.addr %s280, 128
          %s282 = scalar_lea.hbm %s1, %s281
          %s283 = sshll.u32 %s274, 4
          %s284 = int_to_ptr.vmem [resolvable:$true] %s283
          %289 = dma.hbm_to_vmem [thread:$0]  %s282, 1024, %s284, %s271, 256, 128, 8
        $region40: #{tpu_custom_call.1} parent=31 // pred_fallthru
          _
      $region32: #{tpu_custom_call.1} parent=5 // pred_fallthru
        _
      %p290 = scmp.le.s32.totalorder 1, %s22
      %p291 = scmp.lt.s32.totalorder %s22, 5
      %p292 = pnand %p290, %p291
      %p293 = pneg %p292
      // Predicated region
      $region41: #{tpu_custom_call.1} parent=5 // pred_check
        _
      $region42: #{tpu_custom_call.1} parent=5 // pred_check_branch
        %295 = sbr.rel (%p292) target = $region44
      $region43: #{tpu_custom_call.1} parent=5 // pred_region
        %s296 = ssub.s32 %s22, 1
        %s297 = sand.u32 %s47, 1
        %s298 = scalar_lea.sflag [#allocation5], %s297
        %s299 = sand.u32 %s47, 1
        %s300 = smul.addr %s299, 8
        %s301 = scalar_lea.vmem [#allocation4], %s300
        // Predicated region
        $region45: #{tpu_custom_call.1} parent=43 // pred_check
          %p302 = pneg %p60
        $region46: #{tpu_custom_call.1} parent=43 // pred_check_branch
          %304 = sbr.rel (%p302) target = $region48
        $region47: #{tpu_custom_call.1} parent=43 // pred_region
          %305 = dma.done %s298, 128
        $region48: #{tpu_custom_call.1} parent=43 // pred_fallthru
          _
        %s306 = sand.u32 %s27, 1
        %s307 = scalar_lea.sflag [#allocation8], %s306
        %s308 = sand.u32 %s75, 1
        %s309 = smul.addr %s308, 64
        %s310 = scalar_lea.vmem [#allocation7], %s309
        // Predicated region
        $region49: #{tpu_custom_call.1} parent=43 // pred_check
          %p311 = pneg %p88
        $region50: #{tpu_custom_call.1} parent=43 // pred_check_branch
          %313 = sbr.rel (%p311) target = $region52
        $region51: #{tpu_custom_call.1} parent=43 // pred_region
          %314 = dma.done %s307, 1024
        $region52: #{tpu_custom_call.1} parent=43 // pred_fallthru
          _
        // Predicated region
        $region53: #{tpu_custom_call.1} parent=43 // pred_check
          %p315 = pneg %p109
        $region54: #{tpu_custom_call.1} parent=43 // pred_check_branch
          %317 = sbr.rel (%p315) target = $region56
        $region55: #{tpu_custom_call.1} parent=43 // pred_region
          %318 = dma.done [#allocation8], 256
        $region56: #{tpu_custom_call.1} parent=43 // pred_fallthru
          _
        // Predicated region
        $region57: #{tpu_custom_call.1} parent=43 // pred_check
          %p319 = pneg %p130
        $region58: #{tpu_custom_call.1} parent=43 // pred_check_branch
          %321 = sbr.rel (%p319) target = $region60
        $region59: #{tpu_custom_call.1} parent=43 // pred_region
          %322 = dma.done [#allocation11], 256
        $region60: #{tpu_custom_call.1} parent=43 // pred_fallthru
          _
        %s323 = sand.u32 %s47, 1
        %s324 = scalar_lea.sflag [#allocation5], %s323
        %s325 = sand.u32 %s47, 1
        %s326 = smul.addr %s325, 8
        %s327 = scalar_lea.vmem [#allocation4], %s326
        %p328 = pneg %p60
        %p329 = pneg %p57
        %s330 = sand.u32 %s27, 1
        %s331 = scalar_lea.sflag [#allocation8], %s330
        %s332 = sand.u32 %s75, 1
        %s333 = smul.addr %s332, 64
        %s334 = scalar_lea.vmem [#allocation7], %s333
        %p335 = pneg %p88
        %p336 = pneg %p85
        %p337 = pneg %p109
        %p338 = pneg %p106
        %p339 = pneg %p130
        %p340 = pneg %p127
        %p341 = pneg %p151
        %p342 = pneg %p148
        %p343 = pneg %p172
        %p344 = pneg %p169
        %p345 = pneg %p198
        %p346 = pneg %p195
        %s347 = sand.u32 %s185, 1
        %s348 = scalar_lea.sflag [#allocation6], %s347
        %s349 = sand.u32 %s185, 1
        %s350 = smul.addr %s349, 8
        %s351 = scalar_lea.vmem [#allocation12], %s350
        %s352 = smul.u32 8, %s32
        %p354 = scmp.eq.s32.totalorder %s32, 0
        // Predicated region
        $region61: #{tpu_custom_call.1} parent=43 // pred_check
          %p355 = pneg %p354
        $region62: #{tpu_custom_call.1} parent=43 // pred_check_branch
          %357 = sbr.rel (%p355) target = $region64
        $region63: #{tpu_custom_call.1} parent=43 // pred_region
          %v358 = vld [vmem:[%s301] sm:$0xff]
          %v359 = vpack.c.bf16 %v358, %v358
          %v360 = vld [vmem:[#allocation9] sm:$0xf]
          %v361 = vld [vmem:[#allocation9 + $0x4] sm:$0xf]
          %v362 = vld [vmem:[#allocation9 + $0x8] sm:$0xf]
          %v363 = vld [vmem:[#allocation9 + $0xc] sm:$0xf]
          %v364 = vld [vmem:[%s4] sm:$0x1]
          %v366 = vlaneseq
          %v367 = vshrl.u32 %v366, 7
          %v368 = vsub.s32 0, %v367
          %v369 = vrot.slane %v364, %v368
          %v375 = vunpack.c.l.b16 %v360
          %v376 = vunpack.c.l.b16 %v361
          %v377 = vunpack.c.l.b16 %v362
          %v378 = vunpack.c.l.b16 %v363
          %v379 = vpack.c.b16 %v376, %v375
          %v380 = vpack.c.b16 %v378, %v377
          %vm383 = vcmask 261120
          %v385 = vsel %vm383, %v359, 0
          %387 = vmatprep.subr.bf16.mxu0 0
          %388 = vmatpush1.bf16.msra.mxu0 %v379
          %389 = vmatprep.subr.bf16.mxu0 0
          %390 = vmatpush1.bf16.msra.mxu0 %v380
          %391 = vmatprep.subr.bf16.mxu0 0
          %392 = vmatpush1.bf16.msra.mxu0 0
          %393 = vmatprep.subr.bf16.mxu0 0
          %394 = vmatpush1.bf16.msra.mxu0 0
          %395 = vmatprep.subr.bf16.mxu0 0
          %396 = vmatpush1.bf16.msra.mxu0 0
          %397 = vmatprep.subr.bf16.mxu0 0
          %398 = vmatpush1.bf16.msra.mxu0 0
          %399 = vmatprep.subr.bf16.mxu0 0
          %400 = vmatpush1.bf16.msra.mxu0 0
          %401 = vmatprep.subr.bf16.mxu0 0
          %402 = vmatpush1.bf16.msra.mxu0 0
          %403 = vmatprep.subr.bf16.mxu0 0
          %404 = vmatpush1.bf16.msra.mxu0 0
          %405 = vmatprep.subr.bf16.mxu0 0
          %406 = vmatpush1.bf16.msra.mxu0 0
          %407 = vmatprep.subr.bf16.mxu0 0
          %408 = vmatpush1.bf16.msra.mxu0 0
          %409 = vmatprep.subr.bf16.mxu0 0
          %410 = vmatpush1.bf16.msra.mxu0 0
          %411 = vmatprep.subr.bf16.mxu0 0
          %412 = vmatpush1.bf16.msra.mxu0 0
          %413 = vmatprep.subr.bf16.mxu0 0
          %414 = vmatpush1.bf16.msra.mxu0 0
          %415 = vmatprep.subr.bf16.mxu0 0
          %416 = vmatpush1.bf16.msra.mxu0 0
          %417 = vmatprep.subr.bf16.mxu0 0
          %418 = vmatpush1.bf16.msra.mxu0 0
          %419 = vmatprep.mubr.bf16.mxu0 0
          %420 = vmatmul.mubr.bf16.gmra.mrb[0].mxu0 %v385
          %v421 = vpop.f32.mrb[0].mxu0
          %v422 = vadd.f32 %v369, %v421
          %v423 = vpop.f32.mrb[0].mxu0
          %v424 = vpop.f32.mrb[0].mxu0
          %v425 = vpop.f32.mrb[0].mxu0
          %426 = vdwg.mxu0
          %427 = vst.msk [vmem:[#allocation2] sm:$0xff] %vm383, %v422
        $region64: #{tpu_custom_call.1} parent=43 // pred_fallthru
          _
        %v428 = vld [vmem:[%s310] sm:$0xff]
        %v429 = vld [vmem:[%s310 + $0x8] sm:$0xff]
        %v430 = vld [vmem:[%s310 + $0x10] sm:$0xff]
        %v431 = vld [vmem:[%s310 + $0x18] sm:$0xff]
        %v432 = vld [vmem:[%s310 + $0x20] sm:$0xff]
        %v433 = vld [vmem:[%s310 + $0x28] sm:$0xff]
        %v434 = vld [vmem:[%s310 + $0x30] sm:$0xff]
        %v435 = vld [vmem:[%s310 + $0x38] sm:$0xff]
        %v436 = vpack.c.bf16 %v428, %v428
        %v437 = vpack.c.bf16 %v429, %v429
        %v438 = vpack.c.bf16 %v430, %v430
        %v439 = vpack.c.bf16 %v431, %v431
        %v440 = vpack.c.bf16 %v432, %v432
        %v441 = vpack.c.bf16 %v433, %v433
        %v442 = vpack.c.bf16 %v434, %v434
        %v443 = vpack.c.bf16 %v435, %v435
        %v444 = vld [vmem:[#allocation10] sm:$0xf]
        %v445 = vld [vmem:[#allocation10 + $0x4] sm:$0xf]
        %v446 = vld [vmem:[#allocation10 + $0x8] sm:$0xf]
        %v447 = vld [vmem:[#allocation10 + $0xc] sm:$0xf]
        %v456 = vunpack.c.l.b16 %v436
        %v457 = vunpack.c.l.b16 %v437
        %v458 = vunpack.c.l.b16 %v438
        %v459 = vunpack.c.l.b16 %v439
        %v460 = vunpack.c.l.b16 %v440
        %v461 = vunpack.c.l.b16 %v441
        %v462 = vunpack.c.l.b16 %v442
        %v463 = vunpack.c.l.b16 %v443
        %v464 = vpack.c.b16 %v457, %v456
        %v465 = vpack.c.b16 %v459, %v458
        %v466 = vpack.c.b16 %v461, %v460
        %v467 = vpack.c.b16 %v463, %v462
        %v472 = vunpack.c.l.b16 %v444
        %v473 = vunpack.c.l.b16 %v445
        %v474 = vunpack.c.l.b16 %v446
        %v475 = vunpack.c.l.b16 %v447
        %v476 = vpack.c.b16 %v473, %v472
        %v477 = vpack.c.b16 %v475, %v474
        %vm480 = vcmask 261120
        %v482 = vsel %vm480, %v464, 0
        %v485 = vsel %vm480, %v465, 0
        %v488 = vsel %vm480, %v466, 0
        %v491 = vsel %vm480, %v467, 0
        %493 = vmatprep.subr.bf16.mxu0 0
        %494 = vmatpush1.bf16.msra.mxu0 %v476
        %495 = vmatprep.subr.bf16.mxu0 0
        %496 = vmatpush1.bf16.msra.mxu0 %v477
        %497 = vmatprep.subr.bf16.mxu0 0
        %498 = vmatpush1.bf16.msra.mxu0 0
        %499 = vmatprep.subr.bf16.mxu0 0
        %500 = vmatpush1.bf16.msra.mxu0 0
        %501 = vmatprep.subr.bf16.mxu0 0
        %502 = vmatpush1.bf16.msra.mxu0 0
        %503 = vmatprep.subr.bf16.mxu0 0
        %504 = vmatpush1.bf16.msra.mxu0 0
        %505 = vmatprep.subr.bf16.mxu0 0
        %506 = vmatpush1.bf16.msra.mxu0 0
        %507 = vmatprep.subr.bf16.mxu0 0
        %508 = vmatpush1.bf16.msra.mxu0 0
        %509 = vmatprep.subr.bf16.mxu0 0
        %510 = vmatpush1.bf16.msra.mxu0 0
        %511 = vmatprep.subr.bf16.mxu0 0
        %512 = vmatpush1.bf16.msra.mxu0 0
        %513 = vmatprep.subr.bf16.mxu0 0
        %514 = vmatpush1.bf16.msra.mxu0 0
        %515 = vmatprep.subr.bf16.mxu0 0
        %516 = vmatpush1.bf16.msra.mxu0 0
        %517 = vmatprep.subr.bf16.mxu0 0
        %518 = vmatpush1.bf16.msra.mxu0 0
        %519 = vmatprep.subr.bf16.mxu0 0
        %520 = vmatpush1.bf16.msra.mxu0 0
        %521 = vmatprep.subr.bf16.mxu0 0
        %522 = vmatpush1.bf16.msra.mxu0 0
        %523 = vmatprep.subr.bf16.mxu0 0
        %524 = vmatpush1.bf16.msra.mxu0 0
        %525 = vmatprep.mubr.bf16.mxu0 0
        %526 = vmatmul.mubr.bf16.gmra.mrb[0].mxu0 %v482
        %v527 = vpop.f32.mrb[0].mxu0
        %v528 = vadd.f32 0.0, %v527
        %v529 = vpop.f32.mrb[0].mxu0
        %v530 = vpop.f32.mrb[0].mxu0
        %v531 = vadd.f32 0.0, %v530
        %v532 = vpop.f32.mrb[0].mxu0
        %533 = vmatprep.mubr.bf16.mxu0 0
        %534 = vmatmul.mubr.bf16.gmra.mrb[0].mxu0 %v485
        %v535 = vpop.f32.mrb[0].mxu0
        %v536 = vadd.f32 0.0, %v535
        %v537 = vpop.f32.mrb[0].mxu0
        %v538 = vpop.f32.mrb[0].mxu0
        %v539 = vadd.f32 0.0, %v538
        %v540 = vpop.f32.mrb[0].mxu0
        %541 = vmatprep.mubr.bf16.mxu0 0
        %542 = vmatmul.mubr.bf16.gmra.mrb[0].mxu0 %v488
        %v543 = vpop.f32.mrb[0].mxu0
        %v544 = vadd.f32 0.0, %v543
        %v545 = vpop.f32.mrb[0].mxu0
        %v546 = vpop.f32.mrb[0].mxu0
        %v547 = vadd.f32 0.0, %v546
        %v548 = vpop.f32.mrb[0].mxu0
        %549 = vmatprep.mubr.bf16.mxu0 0
        %550 = vmatmul.mubr.bf16.gmra.mrb[0].mxu0 %v491
        %v551 = vpop.f32.mrb[0].mxu0
        %v552 = vadd.f32 0.0, %v551
        %v553 = vpop.f32.mrb[0].mxu0
        %v554 = vpop.f32.mrb[0].mxu0
        %v555 = vadd.f32 0.0, %v554
        %v556 = vpop.f32.mrb[0].mxu0
        %557 = vdwg.mxu0
        %v558 = vld [vmem:[#allocation2] sm:$0xff]
        %v559 = vadd.f32 %v528, %v558
        %v560 = vadd.f32 %v531, %v558
        %v561 = vadd.f32 %v536, %v558
        %v562 = vadd.f32 %v539, %v558
        %v563 = vadd.f32 %v544, %v558
        %v564 = vadd.f32 %v547, %v558
        %v565 = vadd.f32 %v552, %v558
        %v566 = vadd.f32 %v555, %v558
        %v567 = vtanh.pop %v559
        %v568 = vtanh.pop %v560
        %v569 = vtanh.pop %v561
        %v570 = vtanh.pop %v562
        %v571 = vtanh.pop %v563
        %v572 = vtanh.pop %v564
        %v573 = vtanh.pop %v565
        %v574 = vtanh.pop %v566
        %v575 = vld [vmem:[%s5] sm:$0x1]
        %v577 = vlaneseq
        %v578 = vshrl.u32 %v577, 7
        %v579 = vsub.s32 0, %v578
        %v580 = vrot.slane %v575, %v579
        %v582 = vmul.f32 %v567, %v580
        %v583 = vmul.f32 %v568, %v580
        %v584 = vmul.f32 %v569, %v580
        %v585 = vmul.f32 %v570, %v580
        %v586 = vmul.f32 %v571, %v580
        %v587 = vmul.f32 %v572, %v580
        %v588 = vmul.f32 %v573, %v580
        %v589 = vmul.f32 %v574, %v580
        %v590 = vsel %vm480, %v582, 0.0
        %591 = vadd.xlane.f32.xlu0 %v590
        %v592 = vpop.xlane.xlu0 %591
        %v593 = vsel %vm480, %v583, 0.0
        %594 = vadd.xlane.f32.xlu0 %v593
        %v595 = vpop.xlane.xlu0 %594
        %v596 = vsel %vm480, %v584, 0.0
        %597 = vadd.xlane.f32.xlu0 %v596
        %v598 = vpop.xlane.xlu0 %597
        %v599 = vsel %vm480, %v585, 0.0
        %600 = vadd.xlane.f32.xlu0 %v599
        %v601 = vpop.xlane.xlu0 %600
        %v602 = vsel %vm480, %v586, 0.0
        %603 = vadd.xlane.f32.xlu0 %v602
        %v604 = vpop.xlane.xlu0 %603
        %v605 = vsel %vm480, %v587, 0.0
        %606 = vadd.xlane.f32.xlu0 %v605
        %v607 = vpop.xlane.xlu0 %606
        %v608 = vsel %vm480, %v588, 0.0
        %609 = vadd.xlane.f32.xlu0 %v608
        %v610 = vpop.xlane.xlu0 %609
        %v611 = vsel %vm480, %v589, 0.0
        %612 = vadd.xlane.f32.xlu0 %v611
        %v613 = vpop.xlane.xlu0 %612
        %s614 = smul.u32 %s32, 8
        %v623 = vlaneseq
        %v624 = vand.u32 %v623, 127
        %v625 = vlaneseq
        %v626 = vshrl.u32 %v625, 7
        %v627 = vsub.s32 %v624, %v626
        %v628 = vrot.slane %v592, %v627
        %v629 = vlaneseq
        %v630 = vshrl.u32 %v629, 7
        %v631 = vsub.s32 %v624, %v630
        %v632 = vrot.slane %v595, %v631
        %v633 = vlaneseq
        %v634 = vshrl.u32 %v633, 7
        %v635 = vsub.s32 %v624, %v634
        %v636 = vrot.slane %v598, %v635
        %v637 = vlaneseq
        %v638 = vshrl.u32 %v637, 7
        %v639 = vsub.s32 %v624, %v638
        %v640 = vrot.slane %v601, %v639
        %v641 = vlaneseq
        %v642 = vshrl.u32 %v641, 7
        %v643 = vsub.s32 %v624, %v642
        %v644 = vrot.slane %v604, %v643
        %v645 = vlaneseq
        %v646 = vshrl.u32 %v645, 7
        %v647 = vsub.s32 %v624, %v646
        %v648 = vrot.slane %v607, %v647
        %v649 = vlaneseq
        %v650 = vshrl.u32 %v649, 7
        %v651 = vsub.s32 %v624, %v650
        %v652 = vrot.slane %v610, %v651
        %v653 = vlaneseq
        %v654 = vshrl.u32 %v653, 7
        %v655 = vsub.s32 %v624, %v654
        %v656 = vrot.slane %v613, %v655
        %vm657 = vcmask 1041409
        %v658 = vsel %vm657, %v632, %v628
        %vm659 = vcmask 1042434
        %v660 = vsel %vm659, %v636, %v658
        %vm661 = vcmask 1043459
        %v662 = vsel %vm661, %v640, %v660
        %vm663 = vcmask 1044484
        %v664 = vsel %vm663, %v644, %v662
        %vm665 = vcmask 1045509
        %v666 = vsel %vm665, %v648, %v664
        %vm667 = vcmask 1046534
        %v668 = vsel %vm667, %v652, %v666
        %vm669 = vcmask 1047559
        %v670 = vsel %vm669, %v656, %v668
        %s672 = scalar_lea.vmem [#allocation3], %s614
        %vm673 = vcmask 64512
        %674 = vst.msk [vmem:[%s672] sm:$0xff] %vm673, %v670
        %p675 = scmp.eq.s32.totalorder %s32, 1
        // Predicated region
        $region65: #{tpu_custom_call.1} parent=43 // pred_check
          %p676 = pneg %p675
        $region66: #{tpu_custom_call.1} parent=43 // pred_check_branch
          %678 = sbr.rel (%p676) target = $region68
        $region67: #{tpu_custom_call.1} parent=43 // pred_region
          %v679 = vld [vmem:[#allocation3] sm:$0xff]
          %v680 = vld [vmem:[#allocation3 + $0x8] sm:$0xff]
          %681 = vxpose.xlu0.b32.start [1/16] %v679, 128
          %682 = vxpose.xlu0.b32.cont [2/16] %v680, 128
          %683 = vxpose.xlu0.b32.cont [3/16] 0.0, 128
          %684 = vxpose.xlu0.b32.cont [4/16] 0.0, 128
          %685 = vxpose.xlu0.b32.cont [5/16] 0.0, 128
          %686 = vxpose.xlu0.b32.cont [6/16] 0.0, 128
          %687 = vxpose.xlu0.b32.cont [7/16] 0.0, 128
          %688 = vxpose.xlu0.b32.cont [8/16] 0.0, 128
          %689 = vxpose.xlu0.b32.cont [9/16] 0.0, 128
          %690 = vxpose.xlu0.b32.cont [10/16] 0.0, 128
          %691 = vxpose.xlu0.b32.cont [11/16] 0.0, 128
          %692 = vxpose.xlu0.b32.cont [12/16] 0.0, 128
          %693 = vxpose.xlu0.b32.cont [13/16] 0.0, 128
          %694 = vxpose.xlu0.b32.cont [14/16] 0.0, 128
          %695 = vxpose.xlu0.b32.cont [15/16] 0.0, 128
          %696 = vxpose.xlu0.b32.end [16/16] 0.0, 128
          %v697 = vpop.trf.xlu0
          %v698 = vpop.trf.xlu0
          %v699 = vpop.trf.xlu0
          %v700 = vpop.trf.xlu0
          %v701 = vpop.trf.xlu0
          %v702 = vpop.trf.xlu0
          %v703 = vpop.trf.xlu0
          %v704 = vpop.trf.xlu0
          %v705 = vpop.trf.xlu0
          %v706 = vpop.trf.xlu0
          %v707 = vpop.trf.xlu0
          %v708 = vpop.trf.xlu0
          %v709 = vpop.trf.xlu0
          %v710 = vpop.trf.xlu0
          %v711 = vpop.trf.xlu0
          %v712 = vpop.trf.xlu0
          %vm713 = vcmp.lt.s32.totalorder %v624, 12
          %v714 = vsel %vm713, %v697, -1e+30
          %vm715 = vcmask 130048
          %v716 = vsel %vm715, %v714, -inf
          %717 = vmax.xlane.f32.xlu0 %v716
          %v718 = vpop.xlane.xlu0 %717
          %v719 = vsub.f32 %v714, %v718
          %v720 = vmul.f32 %v719, 1.442695
          %v721 = vpow.pop %v720
          %v722 = vsel %vm715, %v721, 0.0
          %723 = vadd.xlane.f32.xlu0 %v722
          %v724 = vpop.xlane.xlu0 %723
          %v725 = vrcp.pop %v724
          %v726 = vmul.f32 %v721, %v725
          %727 = vst.msk [vmem:[%s351] sm:$0xff] %vm715, %v726
        $region68: #{tpu_custom_call.1} parent=43 // pred_fallthru
          _
        %s728 = sand.u32 %s185, 1
        %s729 = scalar_lea.sflag [#allocation6], %s728
        %s730 = sand.u32 %s185, 1
        %s731 = smul.addr %s730, 8
        %s732 = scalar_lea.vmem [#allocation12], %s731
        // Predicated region
        $region69: #{tpu_custom_call.1} parent=43 // pred_check
          %p733 = pneg %p195
        $region70: #{tpu_custom_call.1} parent=43 // pred_check_branch
          %735 = sbr.rel (%p733) target = $region72
        $region71: #{tpu_custom_call.1} parent=43 // pred_region
          %s737 = ssub.s32 128, 128
          %738 = vsyncadd %s729, %s737
          %s739 = smul.addr %s31, 128
          %s740 = scalar_lea.hbm %s6, %s739
          %s742 = sshll.u32 %s732, 4
          %s743 = int_to_ptr.vmem [resolvable:$true] %s742
          %745 = dma.vmem_to_hbm [thread:$0]  %s743, 128, %s740, %s729
        $region72: #{tpu_custom_call.1} parent=43 // pred_fallthru
          _
      $region44: #{tpu_custom_call.1} parent=5 // pred_fallthru
        _
      %p746 = scmp.le.s32.totalorder 2, %s22
      // Predicated region
      $region73: #{tpu_custom_call.1} parent=5 // pred_check
        %p747 = pneg %p746
      $region74: #{tpu_custom_call.1} parent=5 // pred_check_branch
        %749 = sbr.rel (%p747) target = $region76
      $region75: #{tpu_custom_call.1} parent=5 // pred_region
        %s750 = ssub.s32 %s22, 2
        // Predicated region
        $region77: #{tpu_custom_call.1} parent=75 // pred_check
          %p751 = pneg %p201
        $region78: #{tpu_custom_call.1} parent=75 // pred_check_branch
          %753 = sbr.rel (%p751) target = $region80
        $region79: #{tpu_custom_call.1} parent=75 // pred_region
          %s754 = sand.u32 %s186, 1
          %s755 = scalar_lea.sflag [#allocation6], %s754
          %s756 = sand.u32 %s186, 1
          %s757 = smul.addr %s756, 8
          %s758 = scalar_lea.vmem [#allocation12], %s757
          %759 = dma.done %s755, 128
        $region80: #{tpu_custom_call.1} parent=75 // pred_fallthru
          _
      $region76: #{tpu_custom_call.1} parent=5 // pred_fallthru
        _
    $region6: #{tpu_custom_call.1} parent=1 // loop_footer
      %s26 = sadd.s32 1, %s22
    $region7: #{tpu_custom_call.1} parent=1 // loop_footer_branch
      %21 = sbr.rel target = $region3
    $region8: #{tpu_custom_call.1} parent=1 // loop_exit
      _
    %760 = vsyncpa [#allocation5], 1
    %s761 = scalar_lea.sflag [#allocation5], 1
    %762 = vsyncpa %s761, 1
    %763 = vsyncpa [#allocation8], 1
    %s764 = scalar_lea.sflag [#allocation8], 1
    %765 = vsyncpa %s764, 1
    %766 = vsyncpa [#allocation11], 1
    %767 = vsyncpa [#allocation6], 1
    %s768 = scalar_lea.sflag [#allocation6], 1
    %769 = vsyncpa %s768, 1

// kernel: tpu_custom_call.1
$region0: #{tpu_custom_call.1}
  #allocation0 [shape = 'u32[]', space=smem, size = 0x4, offset = 0x4, fixed_abs, tag = 'smem constant byte address 0x4 - core index']
  #allocation1 [shape = 'u32[144,128]{1,0:T(1,128)}', space=vmem, size = 0x12000, scoped, tag = 'internal scratch']
  #allocation2 [shape = 'f32[8,32]{1,0:T(8,128)}', space=vmem, size = 0x1000, scoped, tag = 'scratch operand']
  #allocation3 [shape = 'f32[16,8]{1,0:T(8,128)}', space=vmem, size = 0x2000, scoped, tag = 'scratch operand']
  %s0 = inlined_call_operand.hbm [shape: f32[16,32], index: 0, kind: input, shape index: {}]
  %s1 = inlined_call_operand.hbm [shape: f32[16,16,32], index: 1, kind: input, shape index: {}]
  %s2 = inlined_call_operand.hbm [shape: bf16[32,32], index: 2, kind: input, shape index: {}]
  %s3 = inlined_call_operand.hbm [shape: bf16[32,32], index: 3, kind: input, shape index: {}]
  %s4 = inlined_call_operand.vmem [shape: f32[1,32], index: 4, kind: input, shape index: {}]
  %s5 = inlined_call_operand.vmem [shape: f32[1,32], index: 5, kind: input, shape index: {}]
  %s6 = inlined_call_operand.hbm [shape: f32[16,16], index: 6, kind: output, shape index: {}]
  %s7 = sld [smem:[#allocation0]]
  $region81: #{tpu_custom_call.1} parent=0
    _
  %s9 = ssub.s32 1, %s7
  %s10 = scalar_select 0, %s9, %s7
  $region1: #{tpu_custom_call.1} parent=0
    #allocation4 [shape = 'u8[8192]{0}', space=vmem, size = 0x2000, scoped, tag = 'input window, operand 0']
    #allocation5 [shape = 's32[2]{0}', space=sflag, size = 0x8, scoped, tag = 'scoped memory for tpu_custom_call.1']
    #allocation6 [shape = 's32[2]{0}', space=sflag, size = 0x8, scoped, tag = 'scoped memory for tpu_custom_call.1']
    #allocation7 [shape = 'u8[65536]{0}', space=vmem, size = 0x10000, scoped, tag = 'input window, operand 1']
    #allocation8 [shape = 's32[2]{0}', space=sflag, size = 0x8, scoped, tag = 'scoped memory for tpu_custom_call.1']
    #allocation9 [shape = 'u8[8192]{0}', space=vmem, size = 0x2000, scoped, tag = 'input window, operand 2, single buffered']
    #allocation10 [shape = 'u8[8192]{0}', space=vmem, size = 0x2000, scoped, tag = 'input window, operand 3, single buffered']
    #allocation11 [shape = 's32[1]{0}', space=sflag, size = 0x4, scoped, tag = 'scoped memory for tpu_custom_call.1']
    #allocation12 [shape = 'u8[8192]{0}', space=vmem, size = 0x2000, scoped, tag = 'output window, operand 0']
    %11 = vsyncpa [#allocation5], 0
    %s12 = scalar_lea.sflag [#allocation5], 1
    %13 = vsyncpa %s12, 0
    %14 = vsyncpa [#allocation8], 0
    %s15 = scalar_lea.sflag [#allocation8], 1
    %16 = vsyncpa %s15, 0
    %17 = vsyncpa [#allocation11], 0
    %18 = vsyncpa [#allocation6], 0
    %s19 = scalar_lea.sflag [#allocation6], 1
    %20 = vsyncpa %s19, 0
    loop: start=0, step=1, limit=6
    $region2: #{tpu_custom_call.1} parent=1 // loop_pre_header
      _
    $region3: #{tpu_custom_call.1} parent=1 // loop_header
      %s22 = sphi 0, %s26
      %p23 = scmp.ge.s32.totalorder %s22, 6
      %s29 = sphi 0, %s41
      %s30 = sphi 0, %s37
      %s31 = sphi 0, %s29
      %s32 = sphi 0, %s30
      %s33 = sphi 0, %s31
      %s34 = sphi 0, %s32
      %s44 = sphi 0, %s46
      %s47 = sphi 0, %s44
      %s48 = sphi 0, %s47
      %s64 = sphi 0, %s48
      %s72 = sphi 0, %s74
      %s75 = sphi 0, %s72
      %s76 = sphi 0, %s75
      %s92 = sphi 0, %s76
      %s96 = sphi 0, %s96
      %s98 = sphi 0, %s96
      %s99 = sphi 0, %s98
      %s113 = sphi 0, %s99
      %s117 = sphi 0, %s117
      %s119 = sphi 0, %s117
      %s120 = sphi 0, %s119
      %s134 = sphi 0, %s120
      %s138 = sphi 0, %s138
      %s140 = sphi 0, %s138
      %s141 = sphi 0, %s140
      %s155 = sphi 0, %s141
      %s159 = sphi 0, %s159
      %s161 = sphi 0, %s159
      %s162 = sphi 0, %s161
      %s176 = sphi 0, %s162
      %s182 = sphi 0, %s184
      %s185 = sphi 0, %s182
      %s186 = sphi 0, %s185
      %s202 = sphi 0, %s186
    $region4: #{tpu_custom_call.1} parent=1 // loop_header_branch
      %25 = sbr.rel (%p23) target = $region8
    $region5: #{tpu_custom_call.1} parent=1 // loop_body
      %s27 = ssub.s32 %s22, 1
      %s28 = ssub.s32 %s22, 2
      %s35 = sadd.s32 1, %s30
      %p36 = scmp.ge.s32.totalorder %s35, 2
      %s37 = scalar_select %p36, 0, %s35
      %s38 = sadd.s32 1, %s29
      %s39 = scalar_select %p36, %s38, %s29
      %p40 = scmp.ge.s32.totalorder %s39, 2
      %s41 = scalar_select %p40, 0, %s39
      %s42 = ssub.s32 %s29, %s41
      %p43 = scmp.eq.s32.totalorder %s42, 0
      %s45 = sadd.s32 %s44, 1
      %s46 = scalar_select %p43, %s44, %s45
      %p49 = pneg %p43
      %p50 = scmp.eq.s32.totalorder %s22, 3
      %p51 = por %p49, %p50
      %p52 = scmp.ne.s32.totalorder %s44, %s47
      %p53 = scmp.eq.s32.totalorder %s22, 0
      %p54 = por %p52, %p53
      %p55 = scmp.ne.s32.totalorder %s44, %s47
      %p56 = scmp.eq.s32.totalorder %s27, 3
      %p57 = por %p55, %p56
      %p58 = scmp.ne.s32.totalorder %s47, %s48
      %p59 = scmp.eq.s32.totalorder %s27, 0
      %p60 = por %p58, %p59
      %p61 = scmp.ne.s32.totalorder %s47, %s48
      %p62 = scmp.eq.s32.totalorder %s28, 3
      %p63 = por %p61, %p62
      %p65 = scmp.ne.s32.totalorder %s48, %s64
      %p66 = scmp.eq.s32.totalorder %s28, 0
      %p67 = por %p65, %p66
      %s68 = ssub.s32 %s30, %s37
      %s69 = ssub.s32 %s29, %s41
      %s70 = sor.u32 %s68, %s69
      %p71 = scmp.eq.s32.totalorder %s70, 0
      %s73 = sadd.s32 %s72, 1
      %s74 = scalar_select %p71, %s72, %s73
      %p77 = pneg %p71
      %p78 = scmp.eq.s32.totalorder %s22, 3
      %p79 = por %p77, %p78
      %p80 = scmp.ne.s32.totalorder %s72, %s75
      %p81 = scmp.eq.s32.totalorder %s22, 0
      %p82 = por %p80, %p81
      %p83 = scmp.ne.s32.totalorder %s72, %s75
      %p84 = scmp.eq.s32.totalorder %s27, 3
      %p85 = por %p83, %p84
      %p86 = scmp.ne.s32.totalorder %s75, %s76
      %p87 = scmp.eq.s32.totalorder %s27, 0
      %p88 = por %p86, %p87
      %p89 = scmp.ne.s32.totalorder %s75, %s76
      %p90 = scmp.eq.s32.totalorder %s28, 3
      %p91 = por %p89, %p90
      %p93 = scmp.ne.s32.totalorder %s76, %s92
      %p94 = scmp.eq.s32.totalorder %s28, 0
      %p95 = por %p93, %p94
      %s97 = sadd.s32 %s96, 1
      %p100 = scmp.eq.s32.totalorder %s22, 3
      %p101 = scmp.ne.s32.totalorder %s96, %s98
      %p102 = scmp.eq.s32.totalorder %s22, 0
      %p103 = por %p101, %p102
      %p104 = scmp.ne.s32.totalorder %s96, %s98
      %p105 = scmp.eq.s32.totalorder %s27, 3
      %p106 = por %p104, %p105
      %p107 = scmp.ne.s32.totalorder %s98, %s99
      %p108 = scmp.eq.s32.totalorder %s27, 0
      %p109 = por %p107, %p108
      %p110 = scmp.ne.s32.totalorder %s98, %s99
      %p111 = scmp.eq.s32.totalorder %s28, 3
      %p112 = por %p110, %p111
      %p114 = scmp.ne.s32.totalorder %s99, %s113
      %p115 = scmp.eq.s32.totalorder %s28, 0
      %p116 = por %p114, %p115
      %s118 = sadd.s32 %s117, 1
      %p121 = scmp.eq.s32.totalorder %s22, 3
      %p122 = scmp.ne.s32.totalorder %s117, %s119
      %p123 = scmp.eq.s32.totalorder %s22, 0
      %p124 = por %p122, %p123
      %p125 = scmp.ne.s32.totalorder %s117, %s119
      %p126 = scmp.eq.s32.totalorder %s27, 3
      %p127 = por %p125, %p126
      %p128 = scmp.ne.s32.totalorder %s119, %s120
      %p129 = scmp.eq.s32.totalorder %s27, 0
      %p130 = por %p128, %p129
      %p131 = scmp.ne.s32.totalorder %s119, %s120
      %p132 = scmp.eq.s32.totalorder %s28, 3
      %p133 = por %p131, %p132
      %p135 = scmp.ne.s32.totalorder %s120, %s134
      %p136 = scmp.eq.s32.totalorder %s28, 0
      %p137 = por %p135, %p136
      %s139 = sadd.s32 %s138, 1
      %p142 = scmp.eq.s32.totalorder %s22, 3
      %p143 = scmp.ne.s32.totalorder %s138, %s140
      %p144 = scmp.eq.s32.totalorder %s22, 0
      %p145 = por %p143, %p144
      %p146 = scmp.ne.s32.totalorder %s138, %s140
      %p147 = scmp.eq.s32.totalorder %s27, 3
      %p148 = por %p146, %p147
      %p149 = scmp.ne.s32.totalorder %s140, %s141
      %p150 = scmp.eq.s32.totalorder %s27, 0
      %p151 = por %p149, %p150
      %p152 = scmp.ne.s32.totalorder %s140, %s141
      %p153 = scmp.eq.s32.totalorder %s28, 3
      %p154 = por %p152, %p153
      %p156 = scmp.ne.s32.totalorder %s141, %s155
      %p157 = scmp.eq.s32.totalorder %s28, 0
      %p158 = por %p156, %p157
      %s160 = sadd.s32 %s159, 1
      %p163 = scmp.eq.s32.totalorder %s22, 3
      %p164 = scmp.ne.s32.totalorder %s159, %s161
      %p165 = scmp.eq.s32.totalorder %s22, 0
      %p166 = por %p164, %p165
      %p167 = scmp.ne.s32.totalorder %s159, %s161
      %p168 = scmp.eq.s32.totalorder %s27, 3
      %p169 = por %p167, %p168
      %p170 = scmp.ne.s32.totalorder %s161, %s162
      %p171 = scmp.eq.s32.totalorder %s27, 0
      %p172 = por %p170, %p171
      %p173 = scmp.ne.s32.totalorder %s161, %s162
      %p174 = scmp.eq.s32.totalorder %s28, 3
      %p175 = por %p173, %p174
      %p177 = scmp.ne.s32.totalorder %s162, %s176
      %p178 = scmp.eq.s32.totalorder %s28, 0
      %p179 = por %p177, %p178
      %s180 = ssub.s32 %s29, %s41
      %p181 = scmp.eq.s32.totalorder %s180, 0
      %s183 = sadd.s32 %s182, 1
      %s184 = scalar_select %p181, %s182, %s183
      %p187 = pneg %p181
      %p188 = scmp.eq.s32.totalorder %s22, 3
      %p189 = por %p187, %p188
      %p190 = scmp.ne.s32.totalorder %s182, %s185
      %p191 = scmp.eq.s32.totalorder %s22, 0
      %p192 = por %p190, %p191
      %p193 = scmp.ne.s32.totalorder %s182, %s185
      %p194 = scmp.eq.s32.totalorder %s27, 3
      %p195 = por %p193, %p194
      %p196 = scmp.ne.s32.totalorder %s185, %s186
      %p197 = scmp.eq.s32.totalorder %s27, 0
      %p198 = por %p196, %p197
      %p199 = scmp.ne.s32.totalorder %s185, %s186
      %p200 = scmp.eq.s32.totalorder %s28, 3
      %p201 = por %p199, %p200
      %p203 = scmp.ne.s32.totalorder %s186, %s202
      %p204 = scmp.eq.s32.totalorder %s28, 0
      %p205 = por %p203, %p204
      %p206 = scmp.le.s32.totalorder 1, %s22
      %p207 = scmp.lt.s32.totalorder %s22, 5
      %p208 = pnand %p206, %p207
      %p209 = pneg %p208
      // Predicated region
      $region9: #{tpu_custom_call.1} parent=5 // pred_check
        _
      $region10: #{tpu_custom_call.1} parent=5 // pred_check_branch
        %211 = sbr.rel (%p208) target = $region12
      $region11: #{tpu_custom_call.1} parent=5 // pred_region
        %s212 = ssub.s32 %s22, 1
        // Predicated region
        $region13: #{tpu_custom_call.1} parent=11 // pred_check
          %p213 = pneg %p109
        $region14: #{tpu_custom_call.1} parent=11 // pred_check_branch
          %215 = sbr.rel (%p213) target = $region16
        $region15: #{tpu_custom_call.1} parent=11 // pred_region
          %s217 = ssub.s32 256, 256
          %218 = vsyncadd [#allocation8], %s217
          %s219 = sshll.u32 [#allocation9], 4
          %s220 = int_to_ptr.vmem [resolvable:$true] %s219
          %225 = dma.hbm_to_vmem [thread:$0]  %s2, 256, %s220, [#allocation8], 64, 64, 4
        $region16: #{tpu_custom_call.1} parent=11 // pred_fallthru
          _
        // Predicated region
        $region17: #{tpu_custom_call.1} parent=11 // pred_check
          %p226 = pneg %p130
        $region18: #{tpu_custom_call.1} parent=11 // pred_check_branch
          %228 = sbr.rel (%p226) target = $region20
        $region19: #{tpu_custom_call.1} parent=11 // pred_region
          %s230 = ssub.s32 256, 256
          %231 = vsyncadd [#allocation11], %s230
          %s232 = sshll.u32 [#allocation10], 4
          %s233 = int_to_ptr.vmem [resolvable:$true] %s232
          %238 = dma.hbm_to_vmem [thread:$0]  %s3, 256, %s233, [#allocation11], 64, 64, 4
        $region20: #{tpu_custom_call.1} parent=11 // pred_fallthru
          _
        // Predicated region
        $region21: #{tpu_custom_call.1} parent=11 // pred_check
          %p239 = pneg %p151
        $region22: #{tpu_custom_call.1} parent=11 // pred_check_branch
          %241 = sbr.rel (%p239) target = $region24
        $region23: #{tpu_custom_call.1} parent=11 // pred_region
          _
        $region24: #{tpu_custom_call.1} parent=11 // pred_fallthru
          _
        // Predicated region
        $region25: #{tpu_custom_call.1} parent=11 // pred_check
          %p242 = pneg %p172
        $region26: #{tpu_custom_call.1} parent=11 // pred_check_branch
          %244 = sbr.rel (%p242) target = $region28
        $region27: #{tpu_custom_call.1} parent=11 // pred_region
          _
        $region28: #{tpu_custom_call.1} parent=11 // pred_fallthru
          _
      $region12: #{tpu_custom_call.1} parent=5 // pred_fallthru
        _
      %p245 = scmp.lt.s32.totalorder %s22, 4
      // Predicated region
      $region29: #{tpu_custom_call.1} parent=5 // pred_check
        %p246 = pneg %p245
      $region30: #{tpu_custom_call.1} parent=5 // pred_check_branch
        %248 = sbr.rel (%p246) target = $region32
      $region31: #{tpu_custom_call.1} parent=5 // pred_region
        // Predicated region
        $region33: #{tpu_custom_call.1} parent=31 // pred_check
          %p249 = pneg %p54
        $region34: #{tpu_custom_call.1} parent=31 // pred_check_branch
          %251 = sbr.rel (%p249) target = $region36
        $region35: #{tpu_custom_call.1} parent=31 // pred_region
          %s252 = sand.u32 %s44, 1
          %s253 = scalar_lea.sflag [#allocation5], %s252
          %s254 = sand.u32 %s44, 1
          %s255 = smul.addr %s254, 8
          %s256 = scalar_lea.vmem [#allocation4], %s255
          %s258 = ssub.s32 128, 128
          %259 = vsyncadd %s253, %s258
          %s260 = smul.addr %s29, 128
          %s261 = scalar_lea.hbm %s0, %s260
          %s263 = sshll.u32 %s256, 4
          %s264 = int_to_ptr.vmem [resolvable:$true] %s263
          %266 = dma.hbm_to_vmem [thread:$0]  %s261, 128, %s264, %s253
        $region36: #{tpu_custom_call.1} parent=31 // pred_fallthru
          _
        // Predicated region
        $region37: #{tpu_custom_call.1} parent=31 // pred_check
          %p267 = pneg %p82
        $region38: #{tpu_custom_call.1} parent=31 // pred_check_branch
          %269 = sbr.rel (%p267) target = $region40
        $region39: #{tpu_custom_call.1} parent=31 // pred_region
          %s270 = sand.u32 %s22, 1
          %s271 = scalar_lea.sflag [#allocation8], %s270
          %s272 = sand.u32 %s72, 1
          %s273 = smul.addr %s272, 64
          %s274 = scalar_lea.vmem [#allocation7], %s273
          %s275 = smul.u32 8, %s30
          %s277 = ssub.s32 1024, 1024
          %278 = vsyncadd %s271, %s277
          %s279 = smul.addr %s275, 2
          %s280 = sadd.s32 %s29, %s279
          %s281 = smul.addr %s280, 128
          %s282 = scalar_lea.hbm %s1, %s281
          %s283 = sshll.u32 %s274, 4
          %s284 = int_to_ptr.vmem [resolvable:$true] %s283
          %289 = dma.hbm_to_vmem [thread:$0]  %s282, 1024, %s284, %s271, 256, 128, 8
        $region40: #{tpu_custom_call.1} parent=31 // pred_fallthru
          _
      $region32: #{tpu_custom_call.1} parent=5 // pred_fallthru
        _
      %p290 = scmp.le.s32.totalorder 1, %s22
      %p291 = scmp.lt.s32.totalorder %s22, 5
      %p292 = pnand %p290, %p291
      %p293 = pneg %p292
      // Predicated region
      $region41: #{tpu_custom_call.1} parent=5 // pred_check
        _
      $region42: #{tpu_custom_call.1} parent=5 // pred_check_branch
        %295 = sbr.rel (%p292) target = $region44
      $region43: #{tpu_custom_call.1} parent=5 // pred_region
        %s296 = ssub.s32 %s22, 1
        %s297 = sand.u32 %s47, 1
        %s298 = scalar_lea.sflag [#allocation5], %s297
        %s299 = sand.u32 %s47, 1
        %s300 = smul.addr %s299, 8
        %s301 = scalar_lea.vmem [#allocation4], %s300
        // Predicated region
        $region45: #{tpu_custom_call.1} parent=43 // pred_check
          %p302 = pneg %p60
        $region46: #{tpu_custom_call.1} parent=43 // pred_check_branch
          %304 = sbr.rel (%p302) target = $region48
        $region47: #{tpu_custom_call.1} parent=43 // pred_region
          %305 = dma.done %s298, 128
        $region48: #{tpu_custom_call.1} parent=43 // pred_fallthru
          _
        %s306 = sand.u32 %s27, 1
        %s307 = scalar_lea.sflag [#allocation8], %s306
        %s308 = sand.u32 %s75, 1
        %s309 = smul.addr %s308, 64
        %s310 = scalar_lea.vmem [#allocation7], %s309
        // Predicated region
        $region49: #{tpu_custom_call.1} parent=43 // pred_check
          %p311 = pneg %p88
        $region50: #{tpu_custom_call.1} parent=43 // pred_check_branch
          %313 = sbr.rel (%p311) target = $region52
        $region51: #{tpu_custom_call.1} parent=43 // pred_region
          %314 = dma.done %s307, 1024
        $region52: #{tpu_custom_call.1} parent=43 // pred_fallthru
          _
        // Predicated region
        $region53: #{tpu_custom_call.1} parent=43 // pred_check
          %p315 = pneg %p109
        $region54: #{tpu_custom_call.1} parent=43 // pred_check_branch
          %317 = sbr.rel (%p315) target = $region56
        $region55: #{tpu_custom_call.1} parent=43 // pred_region
          %318 = dma.done [#allocation8], 256
        $region56: #{tpu_custom_call.1} parent=43 // pred_fallthru
          _
        // Predicated region
        $region57: #{tpu_custom_call.1} parent=43 // pred_check
          %p319 = pneg %p130
        $region58: #{tpu_custom_call.1} parent=43 // pred_check_branch
          %321 = sbr.rel (%p319) target = $region60
        $region59: #{tpu_custom_call.1} parent=43 // pred_region
          %322 = dma.done [#allocation11], 256
        $region60: #{tpu_custom_call.1} parent=43 // pred_fallthru
          _
        %s323 = sand.u32 %s47, 1
        %s324 = scalar_lea.sflag [#allocation5], %s323
        %s325 = sand.u32 %s47, 1
        %s326 = smul.addr %s325, 8
        %s327 = scalar_lea.vmem [#allocation4], %s326
        %p328 = pneg %p60
        %p329 = pneg %p57
        %s330 = sand.u32 %s27, 1
        %s331 = scalar_lea.sflag [#allocation8], %s330
        %s332 = sand.u32 %s75, 1
        %s333 = smul.addr %s332, 64
        %s334 = scalar_lea.vmem [#allocation7], %s333
        %p335 = pneg %p88
        %p336 = pneg %p85
        %p337 = pneg %p109
        %p338 = pneg %p106
        %p339 = pneg %p130
        %p340 = pneg %p127
        %p341 = pneg %p151
        %p342 = pneg %p148
        %p343 = pneg %p172
        %p344 = pneg %p169
        %p345 = pneg %p198
        %p346 = pneg %p195
        %s347 = sand.u32 %s185, 1
        %s348 = scalar_lea.sflag [#allocation6], %s347
        %s349 = sand.u32 %s185, 1
        %s350 = smul.addr %s349, 8
        %s351 = scalar_lea.vmem [#allocation12], %s350
        %s352 = smul.u32 8, %s32
        %p354 = scmp.eq.s32.totalorder %s32, 0
        // Predicated region
        $region61: #{tpu_custom_call.1} parent=43 // pred_check
          %p355 = pneg %p354
        $region62: #{tpu_custom_call.1} parent=43 // pred_check_branch
          %357 = sbr.rel (%p355) target = $region64
        $region63: #{tpu_custom_call.1} parent=43 // pred_region
          %v358 = vld [vmem:[%s301] sm:$0xff]
          %v359 = vpack.c.bf16 %v358, %v358
          %v360 = vld [vmem:[#allocation9] sm:$0xf]
          %v361 = vld [vmem:[#allocation9 + $0x4] sm:$0xf]
          %v362 = vld [vmem:[#allocation9 + $0x8] sm:$0xf]
          %v363 = vld [vmem:[#allocation9 + $0xc] sm:$0xf]
          %v364 = vld [vmem:[%s4] sm:$0x1]
          %v366 = vlaneseq
          %v367 = vshrl.u32 %v366, 7
          %v368 = vsub.s32 0, %v367
          %v369 = vrot.slane %v364, %v368
          %v375 = vunpack.c.l.b16 %v360
          %v376 = vunpack.c.l.b16 %v361
          %v377 = vunpack.c.l.b16 %v362
          %v378 = vunpack.c.l.b16 %v363
          %v379 = vpack.c.b16 %v376, %v375
          %v380 = vpack.c.b16 %v378, %v377
          %vm383 = vcmask 261120
          %v385 = vsel %vm383, %v359, 0
          %387 = vmatprep.subr.bf16.mxu0 0
          %388 = vmatpush1.bf16.msra.mxu0 %v379
          %389 = vmatprep.subr.bf16.mxu0 0
          %390 = vmatpush1.bf16.msra.mxu0 %v380
          %391 = vmatprep.subr.bf16.mxu0 0
          %392 = vmatpush1.bf16.msra.mxu0 0
          %393 = vmatprep.subr.bf16.mxu0 0
          %394 = vmatpush1.bf16.msra.mxu0 0
          %395 = vmatprep.subr.bf16.mxu0 0
          %396 = vmatpush1.bf16.msra.mxu0 0
          %397 = vmatprep.subr.bf16.mxu0 0
          %398 = vmatpush1.bf16.msra.mxu0 0
          %399 = vmatprep.subr.bf16.mxu0 0
          %400 = vmatpush1.bf16.msra.mxu0 0
          %401 = vmatprep.subr.bf16.mxu0 0
          %402 = vmatpush1.bf16.msra.mxu0 0
          %403 = vmatprep.subr.bf16.mxu0 0
          %404 = vmatpush1.bf16.msra.mxu0 0
          %405 = vmatprep.subr.bf16.mxu0 0
          %406 = vmatpush1.bf16.msra.mxu0 0
          %407 = vmatprep.subr.bf16.mxu0 0
          %408 = vmatpush1.bf16.msra.mxu0 0
          %409 = vmatprep.subr.bf16.mxu0 0
          %410 = vmatpush1.bf16.msra.mxu0 0
          %411 = vmatprep.subr.bf16.mxu0 0
          %412 = vmatpush1.bf16.msra.mxu0 0
          %413 = vmatprep.subr.bf16.mxu0 0
          %414 = vmatpush1.bf16.msra.mxu0 0
          %415 = vmatprep.subr.bf16.mxu0 0
          %416 = vmatpush1.bf16.msra.mxu0 0
          %417 = vmatprep.subr.bf16.mxu0 0
          %418 = vmatpush1.bf16.msra.mxu0 0
          %419 = vmatprep.mubr.bf16.mxu0 0
          %420 = vmatmul.mubr.bf16.gmra.mrb[0].mxu0 %v385
          %v421 = vpop.f32.mrb[0].mxu0
          %v422 = vadd.f32 %v369, %v421
          %v423 = vpop.f32.mrb[0].mxu0
          %v424 = vpop.f32.mrb[0].mxu0
          %v425 = vpop.f32.mrb[0].mxu0
          %426 = vdwg.mxu0
          %427 = vst.msk [vmem:[#allocation2] sm:$0xff] %vm383, %v422
        $region64: #{tpu_custom_call.1} parent=43 // pred_fallthru
          _
        %v428 = vld [vmem:[%s310] sm:$0xff]
        %v429 = vld [vmem:[%s310 + $0x8] sm:$0xff]
        %v430 = vld [vmem:[%s310 + $0x10] sm:$0xff]
        %v431 = vld [vmem:[%s310 + $0x18] sm:$0xff]
        %v432 = vld [vmem:[%s310 + $0x20] sm:$0xff]
        %v433 = vld [vmem:[%s310 + $0x28] sm:$0xff]
        %v434 = vld [vmem:[%s310 + $0x30] sm:$0xff]
        %v435 = vld [vmem:[%s310 + $0x38] sm:$0xff]
        %v436 = vpack.c.bf16 %v428, %v428
        %v437 = vpack.c.bf16 %v429, %v429
        %v438 = vpack.c.bf16 %v430, %v430
        %v439 = vpack.c.bf16 %v431, %v431
        %v440 = vpack.c.bf16 %v432, %v432
        %v441 = vpack.c.bf16 %v433, %v433
        %v442 = vpack.c.bf16 %v434, %v434
        %v443 = vpack.c.bf16 %v435, %v435
        %v444 = vld [vmem:[#allocation10] sm:$0xf]
        %v445 = vld [vmem:[#allocation10 + $0x4] sm:$0xf]
        %v446 = vld [vmem:[#allocation10 + $0x8] sm:$0xf]
        %v447 = vld [vmem:[#allocation10 + $0xc] sm:$0xf]
        %v456 = vunpack.c.l.b16 %v436
        %v457 = vunpack.c.l.b16 %v437
        %v458 = vunpack.c.l.b16 %v438
        %v459 = vunpack.c.l.b16 %v439
        %v460 = vunpack.c.l.b16 %v440
        %v461 = vunpack.c.l.b16 %v441
        %v462 = vunpack.c.l.b16 %v442
        %v463 = vunpack.c.l.b16 %v443
        %v464 = vpack.c.b16 %v457, %v456
        %v465 = vpack.c.b16 %v459, %v458
        %v466 = vpack.c.b16 %v461, %v460
        %v467 = vpack.c.b16 %v463, %v462
        %v472 = vunpack.c.l.b16 %v444
        %v473 = vunpack.c.l.b16 %v445
        %v474 = vunpack.c.l.b16 %v446
        %v475 = vunpack.c.l.b16 %v447
        %v476 = vpack.c.b16 %v473, %v472
        %v477 = vpack.c.b16 %v475, %v474
        %vm480 = vcmask 261120
        %v482 = vsel %vm480, %v464, 0
        %v485 = vsel %vm480, %v465, 0
        %v488 = vsel %vm480, %v466, 0
        %v491 = vsel %vm480, %v467, 0
        %493 = vmatprep.subr.bf16.mxu0 0
        %494 = vmatpush1.bf16.msra.mxu0 %v476
        %495 = vmatprep.subr.bf16.mxu0 0
        %496 = vmatpush1.bf16.msra.mxu0 %v477
        %497 = vmatprep.subr.bf16.mxu0 0
        %498 = vmatpush1.bf16.msra.mxu0 0
        %499 = vmatprep.subr.bf16.mxu0 0
        %500 = vmatpush1.bf16.msra.mxu0 0
        %501 = vmatprep.subr.bf16.mxu0 0
        %502 = vmatpush1.bf16.msra.mxu0 0
        %503 = vmatprep.subr.bf16.mxu0 0
        %504 = vmatpush1.bf16.msra.mxu0 0
        %505 = vmatprep.subr.bf16.mxu0 0
        %506 = vmatpush1.bf16.msra.mxu0 0
        %507 = vmatprep.subr.bf16.mxu0 0
        %508 = vmatpush1.bf16.msra.mxu0 0
        %509 = vmatprep.subr.bf16.mxu0 0
        %510 = vmatpush1.bf16.msra.mxu0 0
        %511 = vmatprep.subr.bf16.mxu0 0
        %512 = vmatpush1.bf16.msra.mxu0 0
        %513 = vmatprep.subr.bf16.mxu0 0
        %514 = vmatpush1.bf16.msra.mxu0 0
        %515 = vmatprep.subr.bf16.mxu0 0
        %516 = vmatpush1.bf16.msra.mxu0 0
        %517 = vmatprep.subr.bf16.mxu0 0
        %518 = vmatpush1.bf16.msra.mxu0 0
        %519 = vmatprep.subr.bf16.mxu0 0
        %520 = vmatpush1.bf16.msra.mxu0 0
        %521 = vmatprep.subr.bf16.mxu0 0
        %522 = vmatpush1.bf16.msra.mxu0 0
        %523 = vmatprep.subr.bf16.mxu0 0
        %524 = vmatpush1.bf16.msra.mxu0 0
        %525 = vmatprep.mubr.bf16.mxu0 0
        %526 = vmatmul.mubr.bf16.gmra.mrb[0].mxu0 %v482
        %v527 = vpop.f32.mrb[0].mxu0
        %v528 = vadd.f32 0.0, %v527
        %v529 = vpop.f32.mrb[0].mxu0
        %v530 = vpop.f32.mrb[0].mxu0
        %v531 = vadd.f32 0.0, %v530
        %v532 = vpop.f32.mrb[0].mxu0
        %533 = vmatprep.mubr.bf16.mxu0 0
        %534 = vmatmul.mubr.bf16.gmra.mrb[0].mxu0 %v485
        %v535 = vpop.f32.mrb[0].mxu0
        %v536 = vadd.f32 0.0, %v535
        %v537 = vpop.f32.mrb[0].mxu0
        %v538 = vpop.f32.mrb[0].mxu0
        %v539 = vadd.f32 0.0, %v538
        %v540 = vpop.f32.mrb[0].mxu0
        %541 = vmatprep.mubr.bf16.mxu0 0
        %542 = vmatmul.mubr.bf16.gmra.mrb[0].mxu0 %v488
        %v543 = vpop.f32.mrb[0].mxu0
        %v544 = vadd.f32 0.0, %v543
        %v545 = vpop.f32.mrb[0].mxu0
        %v546 = vpop.f32.mrb[0].mxu0
        %v547 = vadd.f32 0.0, %v546
        %v548 = vpop.f32.mrb[0].mxu0
        %549 = vmatprep.mubr.bf16.mxu0 0
        %550 = vmatmul.mubr.bf16.gmra.mrb[0].mxu0 %v491
        %v551 = vpop.f32.mrb[0].mxu0
        %v552 = vadd.f32 0.0, %v551
        %v553 = vpop.f32.mrb[0].mxu0
        %v554 = vpop.f32.mrb[0].mxu0
        %v555 = vadd.f32 0.0, %v554
        %v556 = vpop.f32.mrb[0].mxu0
        %557 = vdwg.mxu0
        %v558 = vld [vmem:[#allocation2] sm:$0xff]
        %v559 = vadd.f32 %v528, %v558
        %v560 = vadd.f32 %v531, %v558
        %v561 = vadd.f32 %v536, %v558
        %v562 = vadd.f32 %v539, %v558
        %v563 = vadd.f32 %v544, %v558
        %v564 = vadd.f32 %v547, %v558
        %v565 = vadd.f32 %v552, %v558
        %v566 = vadd.f32 %v555, %v558
        %v567 = vtanh.pop %v559
        %v568 = vtanh.pop %v560
        %v569 = vtanh.pop %v561
        %v570 = vtanh.pop %v562
        %v571 = vtanh.pop %v563
        %v572 = vtanh.pop %v564
        %v573 = vtanh.pop %v565
        %v574 = vtanh.pop %v566
        %v575 = vld [vmem:[%s5] sm:$0x1]
        %v577 = vlaneseq
        %v578 = vshrl.u32 %v577, 7
        %v579 = vsub.s32 0, %v578
        %v580 = vrot.slane %v575, %v579
        %v582 = vmul.f32 %v567, %v580
        %v583 = vmul.f32 %v568, %v580
        %v584 = vmul.f32 %v569, %v580
        %v585 = vmul.f32 %v570, %v580
        %v586 = vmul.f32 %v571, %v580
        %v587 = vmul.f32 %v572, %v580
        %v588 = vmul.f32 %v573, %v580
        %v589 = vmul.f32 %v574, %v580
        %v590 = vsel %vm480, %v582, 0.0
        %591 = vadd.xlane.f32.xlu0 %v590
        %v592 = vpop.xlane.xlu0 %591
        %v593 = vsel %vm480, %v583, 0.0
        %594 = vadd.xlane.f32.xlu0 %v593
        %v595 = vpop.xlane.xlu0 %594
        %v596 = vsel %vm480, %v584, 0.0
        %597 = vadd.xlane.f32.xlu0 %v596
        %v598 = vpop.xlane.xlu0 %597
        %v599 = vsel %vm480, %v585, 0.0
        %600 = vadd.xlane.f32.xlu0 %v599
        %v601 = vpop.xlane.xlu0 %600
        %v602 = vsel %vm480, %v586, 0.0
        %603 = vadd.xlane.f32.xlu0 %v602
        %v604 = vpop.xlane.xlu0 %603
        %v605 = vsel %vm480, %v587, 0.0
        %606 = vadd.xlane.f32.xlu0 %v605
        %v607 = vpop.xlane.xlu0 %606
        %v608 = vsel %vm480, %v588, 0.0
        %609 = vadd.xlane.f32.xlu0 %v608
        %v610 = vpop.xlane.xlu0 %609
        %v611 = vsel %vm480, %v589, 0.0
        %612 = vadd.xlane.f32.xlu0 %v611
        %v613 = vpop.xlane.xlu0 %612
        %s614 = smul.u32 %s32, 8
        %v623 = vlaneseq
        %v624 = vand.u32 %v623, 127
        %v625 = vlaneseq
        %v626 = vshrl.u32 %v625, 7
        %v627 = vsub.s32 %v624, %v626
        %v628 = vrot.slane %v592, %v627
        %v629 = vlaneseq
        %v630 = vshrl.u32 %v629, 7
        %v631 = vsub.s32 %v624, %v630
        %v632 = vrot.slane %v595, %v631
        %v633 = vlaneseq
        %v634 = vshrl.u32 %v633, 7
        %v635 = vsub.s32 %v624, %v634
        %v636 = vrot.slane %v598, %v635
        %v637 = vlaneseq
        %v638 = vshrl.u32 %v637, 7
        %v639 = vsub.s32 %v624, %v638
        %v640 = vrot.slane %v601, %v639
        %v641 = vlaneseq
        %v642 = vshrl.u32 %v641, 7
        %v643 = vsub.s32 %v624, %v642
        %v644 = vrot.slane %v604, %v643
        %v645 = vlaneseq
        %v646 = vshrl.u32 %v645, 7
        %v647 = vsub.s32 %v624, %v646
        %v648 = vrot.slane %v607, %v647
        %v649 = vlaneseq
        %v650 = vshrl.u32 %v649, 7
        %v651 = vsub.s32 %v624, %v650
        %v652 = vrot.slane %v610, %v651
        %v653 = vlaneseq
        %v654 = vshrl.u32 %v653, 7
        %v655 = vsub.s32 %v624, %v654
        %v656 = vrot.slane %v613, %v655
        %vm657 = vcmask 1041409
        %v658 = vsel %vm657, %v632, %v628
        %vm659 = vcmask 1042434
        %v660 = vsel %vm659, %v636, %v658
        %vm661 = vcmask 1043459
        %v662 = vsel %vm661, %v640, %v660
        %vm663 = vcmask 1044484
        %v664 = vsel %vm663, %v644, %v662
        %vm665 = vcmask 1045509
        %v666 = vsel %vm665, %v648, %v664
        %vm667 = vcmask 1046534
        %v668 = vsel %vm667, %v652, %v666
        %vm669 = vcmask 1047559
        %v670 = vsel %vm669, %v656, %v668
        %s672 = scalar_lea.vmem [#allocation3], %s614
        %vm673 = vcmask 64512
        %674 = vst.msk [vmem:[%s672] sm:$0xff] %vm673, %v670
        %p675 = scmp.eq.s32.totalorder %s32, 1
        // Predicated region
        $region65: #{tpu_custom_call.1} parent=43 // pred_check
          %p676 = pneg %p675
        $region66: #{tpu_custom_call.1} parent=43 // pred_check_branch
          %678 = sbr.rel (%p676) target = $region68
        $region67: #{tpu_custom_call.1} parent=43 // pred_region
          %v679 = vld [vmem:[#allocation3] sm:$0xff]
          %v680 = vld [vmem:[#allocation3 + $0x8] sm:$0xff]
          %681 = vxpose.xlu0.b32.start [1/16] %v679, 128
          %682 = vxpose.xlu0.b32.cont [2/16] %v680, 128
          %683 = vxpose.xlu0.b32.cont [3/16] 0.0, 128
          %684 = vxpose.xlu0.b32.cont [4/16] 0.0, 128
          %685 = vxpose.xlu0.b32.cont [5/16] 0.0, 128
          %686 = vxpose.xlu0.b32.cont [6/16] 0.0, 128
          %687 = vxpose.xlu0.b32.cont [7/16] 0.0, 128
          %688 = vxpose.xlu0.b32.cont [8/16] 0.0, 128
          %689 = vxpose.xlu0.b32.cont [9/16] 0.0, 128
          %690 = vxpose.xlu0.b32.cont [10/16] 0.0, 128
          %691 = vxpose.xlu0.b32.cont [11/16] 0.0, 128
          %692 = vxpose.xlu0.b32.cont [12/16] 0.0, 128
          %693 = vxpose.xlu0.b32.cont [13/16] 0.0, 128
          %694 = vxpose.xlu0.b32.cont [14/16] 0.0, 128
          %695 = vxpose.xlu0.b32.cont [15/16] 0.0, 128
          %696 = vxpose.xlu0.b32.end [16/16] 0.0, 128
          %v697 = vpop.trf.xlu0
          %v698 = vpop.trf.xlu0
          %v699 = vpop.trf.xlu0
          %v700 = vpop.trf.xlu0
          %v701 = vpop.trf.xlu0
          %v702 = vpop.trf.xlu0
          %v703 = vpop.trf.xlu0
          %v704 = vpop.trf.xlu0
          %v705 = vpop.trf.xlu0
          %v706 = vpop.trf.xlu0
          %v707 = vpop.trf.xlu0
          %v708 = vpop.trf.xlu0
          %v709 = vpop.trf.xlu0
          %v710 = vpop.trf.xlu0
          %v711 = vpop.trf.xlu0
          %v712 = vpop.trf.xlu0
          %vm713 = vcmp.lt.s32.totalorder %v624, 12
          %v714 = vsel %vm713, %v697, -1e+30
          %vm715 = vcmask 130048
          %v716 = vsel %vm715, %v714, -inf
          %717 = vmax.xlane.f32.xlu0 %v716
          %v718 = vpop.xlane.xlu0 %717
          %v719 = vsub.f32 %v714, %v718
          %v720 = vmul.f32 %v719, 1.442695
          %v721 = vpow.pop %v720
          %v722 = vsel %vm715, %v721, 0.0
          %723 = vadd.xlane.f32.xlu0 %v722
          %v724 = vpop.xlane.xlu0 %723
          %v725 = vrcp.pop %v724
          %v726 = vmul.f32 %v721, %v725
          %727 = vst.msk [vmem:[%s351] sm:$0xff] %vm715, %v726
        $region68: #{tpu_custom_call.1} parent=43 // pred_fallthru
          _
        %s728 = sand.u32 %s185, 1
        %s729 = scalar_lea.sflag [#allocation6], %s728
        %s730 = sand.u32 %s185, 1
        %s731 = smul.addr %s730, 8
        %s732 = scalar_lea.vmem [#allocation12], %s731
        // Predicated region
        $region69: #{tpu_custom_call.1} parent=43 // pred_check
          %p733 = pneg %p195
        $region70: #{tpu_custom_call.1} parent=43 // pred_check_branch
          %735 = sbr.rel (%p733) target = $region72
        $region71: #{tpu_custom_call.1} parent=43 // pred_region
          %s737 = ssub.s32 128, 128
          %738 = vsyncadd %s729, %s737
          %s739 = smul.addr %s31, 128
          %s740 = scalar_lea.hbm %s6, %s739
          %s742 = sshll.u32 %s732, 4
          %s743 = int_to_ptr.vmem [resolvable:$true] %s742
          %745 = dma.vmem_to_hbm [thread:$0]  %s743, 128, %s740, %s729
        $region72: #{tpu_custom_call.1} parent=43 // pred_fallthru
          _
      $region44: #{tpu_custom_call.1} parent=5 // pred_fallthru
        _
      %p746 = scmp.le.s32.totalorder 2, %s22
      // Predicated region
      $region73: #{tpu_custom_call.1} parent=5 // pred_check
        %p747 = pneg %p746
      $region74: #{tpu_custom_call.1} parent=5 // pred_check_branch
        %749 = sbr.rel (%p747) target = $region76
      $region75: #{tpu_custom_call.1} parent=5 // pred_region
        %s750 = ssub.s32 %s22, 2
        // Predicated region
        $region77: #{tpu_custom_call.1} parent=75 // pred_check
          %p751 = pneg %p201
        $region78: #{tpu_custom_call.1} parent=75 // pred_check_branch
          %753 = sbr.rel (%p751) target = $region80
        $region79: #{tpu_custom_call.1} parent=75 // pred_region
          %s754 = sand.u32 %s186, 1
          %s755 = scalar_lea.sflag [#allocation6], %s754
          %s756 = sand.u32 %s186, 1
          %s757 = smul.addr %s756, 8
          %s758 = scalar_lea.vmem [#allocation12], %s757
          %759 = dma.done %s755, 128
        $region80: #{tpu_custom_call.1} parent=75 // pred_fallthru
          _
      $region76: #{tpu_custom_call.1} parent=5 // pred_fallthru
        _
    $region6: #{tpu_custom_call.1} parent=1 // loop_footer
      %s26 = sadd.s32 1, %s22
    $region7: #{tpu_custom_call.1} parent=1 // loop_footer_branch
      %21 = sbr.rel target = $region3
    $region8: #{tpu_custom_call.1} parent=1 // loop_exit
      _
    %760 = vsyncpa [#allocation5], 1
    %s761 = scalar_lea.sflag [#allocation5], 1
    %762 = vsyncpa %s761, 1
    %763 = vsyncpa [#allocation8], 1
    %s764 = scalar_lea.sflag [#allocation8], 1
    %765 = vsyncpa %s764, 1
    %766 = vsyncpa [#allocation11], 1
    %767 = vsyncpa [#allocation6], 1
    %s768 = scalar_lea.sflag [#allocation6], 1
    %769 = vsyncpa %s768, 1

</llo_original>
